<compile_context>
chip_gen: v5e
topology: v5e:2x2
jax: 0.10.0
libtpu: 0.0.40
codegen_flags: <defaults>
</compile_context>

<pallas_src>
import jax
import jax.numpy as jnp
import numpy as np
from jax.experimental import pallas as pl
from jax.experimental.pallas import tpu as pltpu

# Small, shape-consistent config (the module itself carries no shapes).
B, S, D, H, FF = 2, 8, 32, 4, 64
NUM_LAYERS = 2
DH = D // H
BS = B * S
EPS = 1e-5  # torch.nn.LayerNorm default

# Packed small-vector buffer layout: one 128-lane row per field, per layer.
VEC_LANES = 128
(ROW_BQKV, ROW_BO, ROW_B1, ROW_B2,
 ROW_G1, ROW_BE1, ROW_G2, ROW_BE2) = range(8)
VEC_ROWS = 8


def encoder_kernel(x_ref, wqkv_ref, wo_ref, w1_ref, w2_ref, vec_ref,
                   xo_ref, attn_ref):
    f32 = jnp.float32
    x = x_ref[...]                                  # (B*S, D)
    scale = 1.0 / (DH ** 0.5)

    for l in range(NUM_LAYERS):                     # static unroll over layers
        wqkv = wqkv_ref[l]                          # (D, 3D)
        vec = vec_ref[l]                            # (8, 128) packed vectors
        bqkv = vec[ROW_BQKV:ROW_BQKV + 1, :3 * D]   # (1, 3D)
        bo = vec[ROW_BO:ROW_BO + 1, :D]
        b1 = vec[ROW_B1:ROW_B1 + 1, :FF]
        b2 = vec[ROW_B2:ROW_B2 + 1, :D]
        g1 = vec[ROW_G1:ROW_G1 + 1, :D]
        be1 = vec[ROW_BE1:ROW_BE1 + 1, :D]
        g2 = vec[ROW_G2:ROW_G2 + 1, :D]
        be2 = vec[ROW_BE2:ROW_BE2 + 1, :D]

        # ---- fused QKV projection (one MXU dot); scale folded into q ----
        qkv = jnp.dot(x, wqkv, preferred_element_type=f32) + bqkv   # (BS, 3D)
        q = qkv[:, :D] * scale
        k = qkv[:, D:2 * D]
        v = qkv[:, 2 * D:]

        # ---- multi-head self-attention, batched over the batch axis ----
        ctx_parts, attn_parts = [], []
        for h in range(H):                          # static unroll over heads
            sl = slice(h * DH, (h + 1) * DH)
            qh = q[:, sl].reshape(B, S, DH)         # leading-dim split (free)
            kh = k[:, sl].reshape(B, S, DH)
            vh = v[:, sl].reshape(B, S, DH)
            s = jnp.einsum("bqd,bkd->bqk", qh, kh,
                           preferred_element_type=f32)              # (B,S,S)
            s = s - jnp.max(s, axis=-1, keepdims=True)
            p = jnp.exp(s)
            # precomputed reciprocal multiply (exact, keeps 1e-4 tolerance)
            p = p * (1.0 / jnp.sum(p, axis=-1, keepdims=True))
            attn_parts.append(p.reshape(BS, S))     # leading-dim merge (free)
            ctx_parts.append(
                jnp.einsum("bqk,bkd->bqd", p, vh,
                           preferred_element_type=f32).reshape(BS, DH))

        # single, wider store of this layer's attention maps: (BS, H*S)
        attn_ref[l] = jnp.concatenate(attn_parts, axis=1)
        ctx = jnp.concatenate(ctx_parts, axis=1)                    # (BS, D)

        attn_out = jnp.dot(ctx, wo_ref[l], preferred_element_type=f32) + bo

        # ---- residual + LayerNorm 1 ----
        y = x + attn_out
        mu = jnp.mean(y, axis=-1, keepdims=True)
        var = jnp.mean((y - mu) ** 2, axis=-1, keepdims=True)
        y = (y - mu) * jax.lax.rsqrt(var + EPS) * g1 + be1

        # ---- feed-forward ----
        h1 = jnp.maximum(
            jnp.dot(y, w1_ref[l], preferred_element_type=f32) + b1, 0.0)
        ff = jnp.dot(h1, w2_ref[l], preferred_element_type=f32) + b2

        # ---- residual + LayerNorm 2 ----
        z = y + ff
        mu2 = jnp.mean(z, axis=-1, keepdims=True)
        var2 = jnp.mean((z - mu2) ** 2, axis=-1, keepdims=True)
        z = (z - mu2) * jax.lax.rsqrt(var2 + EPS) * g2 + be2

        x = z

    xo_ref[...] = x


# --------------------------- param packing ---------------------------------
def pack_params(layer_params_list):
    """Stack per-layer params into a handful of DMA-friendly arrays."""
    def pad_row(v):
        v = v.reshape(-1)
        return jnp.pad(v, (0, VEC_LANES - v.shape[0]))

    wqkv, wo, w1, w2, vec = [], [], [], [], []
    for p in layer_params_list:
        wqkv.append(jnp.concatenate([p["wq"], p["wk"], p["wv"]], axis=1))
        wo.append(p["wo"])
        w1.append(p["w1"])
        w2.append(p["w2"])
        vec.append(jnp.stack([
            pad_row(jnp.concatenate([p["bq"].reshape(-1),
                                     p["bk"].reshape(-1),
                                     p["bv"].reshape(-1)])),
            pad_row(p["bo"]), pad_row(p["b1"]), pad_row(p["b2"]),
            pad_row(p["g1"]), pad_row(p["be1"]),
            pad_row(p["g2"]), pad_row(p["be2"]),
        ]))
    return (jnp.stack(wqkv), jnp.stack(wo), jnp.stack(w1), jnp.stack(w2),
            jnp.stack(vec))


# ------------------------------ wrapper -------------------------------------
@jax.jit
def _encoder_call(x, wqkv, wo, w1, w2, vec):
    vmem = pl.BlockSpec(memory_space=pltpu.MemorySpace.VMEM)
    xo, attn = pl.pallas_call(
        encoder_kernel,
        out_shape=(jax.ShapeDtypeStruct((BS, D), jnp.float32),
                   jax.ShapeDtypeStruct((NUM_LAYERS, BS, H * S), jnp.float32)),
        in_specs=[vmem] * 6,
        out_specs=(vmem, vmem),
    )(x.reshape(BS, D), wqkv, wo, w1, w2, vec)
    x_out = xo.reshape(B, S, D)
    # (L, B*S, H*S) -> (L, B, S, H, S) -> (L, B, H, S, S)   (wrapper-side, XLA)
    attn = attn.reshape(NUM_LAYERS, B, S, H, S).transpose(0, 1, 3, 2, 4)
    return x_out, [attn[l] for l in range(NUM_LAYERS)]


def encoder_pallas(x, layer_params_list):
    """Mirror of Encoder.forward: loop layers (fused in-kernel), collect attn."""
    packed = pack_params(layer_params_list)
    return _encoder_call(x, *packed)


# ------------------------- pure-JAX reference ------------------------------
def encoder_layer_ref(x, p):
    q = x @ p["wq"] + p["bq"]
    k = x @ p["wk"] + p["bk"]
    v = x @ p["wv"] + p["bv"]
    qh = q.reshape(B, S, H, DH).transpose(0, 2, 1, 3)
    kh = k.reshape(B, S, H, DH).transpose(0, 2, 1, 3)
    vh = v.reshape(B, S, H, DH).transpose(0, 2, 1, 3)
    s = jnp.einsum("bhqd,bhkd->bhqk", qh, kh) / (DH ** 0.5)
    attn = jax.nn.softmax(s, axis=-1)
    ctx = jnp.einsum("bhqk,bhkd->bhqd", attn, vh)
    ctx = ctx.transpose(0, 2, 1, 3).reshape(B, S, D)
    ao = ctx @ p["wo"] + p["bo"]

    def ln(y, g, b):
        mu = jnp.mean(y, -1, keepdims=True)
        var = jnp.mean((y - mu) ** 2, -1, keepdims=True)
        return (y - mu) * jax.lax.rsqrt(var + EPS) * g + b

    y = ln(x + ao, p["g1"], p["be1"])
    ff = jnp.maximum(y @ p["w1"] + p["b1"], 0.0) @ p["w2"] + p["b2"]
    z = ln(y + ff, p["g2"], p["be2"])
    return z, attn


def encoder_ref(x, layer_params_list):
    attns = []
    for p in layer_params_list:
        x, a = encoder_layer_ref(x, p)
        attns.append(a)
    return x, attns


# ---------------------------- param init -----------------------------------
def init_layer_params(key):
    ks = jax.random.split(key, 6)
    f32 = jnp.float32
    return {
        "wq": jax.random.normal(ks[0], (D, D), f32) * 0.05,
        "bq": jnp.zeros((1, D), f32),
        "wk": jax.random.normal(ks[1], (D, D), f32) * 0.05,
        "bk": jnp.zeros((1, D), f32),
        "wv": jax.random.normal(ks[2], (D, D), f32) * 0.05,
        "bv": jnp.zeros((1, D), f32),
        "wo": jax.random.normal(ks[3], (D, D), f32) * 0.05,
        "bo": jnp.zeros((1, D), f32),
        "w1": jax.random.normal(ks[4], (D, FF), f32) * 0.05,
        "b1": jnp.zeros((1, FF), f32),
        "w2": jax.random.normal(ks[5], (FF, D), f32) * 0.05,
        "b2": jnp.zeros((1, D), f32),
        "g1": jnp.ones((1, D), f32),
        "be1": jnp.zeros((1, D), f32),
        "g2": jnp.ones((1, D), f32),
        "be2": jnp.zeros((1, D), f32),
    }


if __name__ == "__main__":
    root = jax.random.PRNGKey(0)
    k_x, *k_layers = jax.random.split(root, NUM_LAYERS + 1)
    x = jax.random.normal(k_x, (B, S, D), jnp.float32)
    layer_params = [init_layer_params(k) for k in k_layers]

    x_out, attns = encoder_pallas(x, layer_params)
    x_out = jax.block_until_ready(x_out)
    attns = [jax.block_until_ready(a) for a in attns]

    x_ref, attns_ref = encoder_ref(x, layer_params)
    assert x_out.shape == (B, S, D)
    assert len(attns) == NUM_LAYERS and attns[0].shape == (B, H, S, S)
    np.testing.assert_allclose(np.asarray(x_out), np.asarray(x_ref),
                               rtol=1e-4, atol=1e-4)
    for a, ar in zip(attns, attns_ref):
        np.testing.assert_allclose(np.asarray(a), np.asarray(ar),
                                   rtol=1e-4, atol=1e-4)

    print("KERNEL_OK")
</pallas_src>

<mosaic_0001>
module attributes {stable_mosaic.version = 11 : i64} {
  func.func @encoder_kernel(%arg0: memref<16x32xf32, #tpu.memory_space<vmem>>, %arg1: memref<2x32x96xf32, #tpu.memory_space<vmem>>, %arg2: memref<2x32x32xf32, #tpu.memory_space<vmem>>, %arg3: memref<2x32x64xf32, #tpu.memory_space<vmem>>, %arg4: memref<2x64x32xf32, #tpu.memory_space<vmem>>, %arg5: memref<2x8x128xf32, #tpu.memory_space<vmem>>, %arg6: memref<16x32xf32, #tpu.memory_space<vmem>>, %arg7: memref<2x16x32xf32, #tpu.memory_space<vmem>>) attributes {dimension_semantics = [], scalar_prefetch = 0 : i64, scratch_operands = 0 : i64, tpu.core_type = #tpu.core_type<tc>} {
    %c0 = arith.constant 0 : index
    %c0_0 = arith.constant 0 : index
    %0 = vector.load %arg0[%c0, %c0_0] : memref<16x32xf32, #tpu.memory_space<vmem>>, vector<16x32xf32>
    %c0_1 = arith.constant 0 : index
    %c0_2 = arith.constant 0 : index
    %c0_3 = arith.constant 0 : index
    %1 = vector.load %arg1[%c0_1, %c0_2, %c0_3] : memref<2x32x96xf32, #tpu.memory_space<vmem>>, vector<1x32x96xf32>
    %2 = vector.shape_cast %1 : vector<1x32x96xf32> to vector<32x96xf32>
    %c0_4 = arith.constant 0 : index
    %c0_5 = arith.constant 0 : index
    %c0_6 = arith.constant 0 : index
    %3 = vector.load %arg5[%c0_4, %c0_5, %c0_6] : memref<2x8x128xf32, #tpu.memory_space<vmem>>, vector<1x8x128xf32>
    %4 = vector.shape_cast %3 : vector<1x8x128xf32> to vector<8x128xf32>
    %5 = vector.extract_strided_slice %4 {offsets = [0, 0], sizes = [1, 96], strides = [1, 1]} : vector<8x128xf32> to vector<1x96xf32>
    %6 = vector.extract_strided_slice %4 {offsets = [1, 0], sizes = [1, 32], strides = [1, 1]} : vector<8x128xf32> to vector<1x32xf32>
    %7 = vector.extract_strided_slice %4 {offsets = [2, 0], sizes = [1, 64], strides = [1, 1]} : vector<8x128xf32> to vector<1x64xf32>
    %8 = vector.extract_strided_slice %4 {offsets = [3, 0], sizes = [1, 32], strides = [1, 1]} : vector<8x128xf32> to vector<1x32xf32>
    %9 = vector.extract_strided_slice %4 {offsets = [4, 0], sizes = [1, 32], strides = [1, 1]} : vector<8x128xf32> to vector<1x32xf32>
    %10 = vector.extract_strided_slice %4 {offsets = [5, 0], sizes = [1, 32], strides = [1, 1]} : vector<8x128xf32> to vector<1x32xf32>
    %11 = vector.extract_strided_slice %4 {offsets = [6, 0], sizes = [1, 32], strides = [1, 1]} : vector<8x128xf32> to vector<1x32xf32>
    %12 = vector.extract_strided_slice %4 {offsets = [7, 0], sizes = [1, 32], strides = [1, 1]} : vector<8x128xf32> to vector<1x32xf32>
    %cst = arith.constant dense<0.000000e+00> : vector<16x96xf32>
    %13 = tpu.matmul %0, %2, %cst {dimension_numbers = #tpu.dot_dimension_numbers<[1], [0], [0], [1], [0, 0, 1, 1], [], []>} : vector<16x32xf32>, vector<32x96xf32>, vector<16x96xf32> -> vector<16x96xf32>
    %14 = vector.broadcast %5 : vector<1x96xf32> to vector<16x96xf32>
    %15 = arith.addf %13, %14 : vector<16x96xf32>
    %16 = vector.extract_strided_slice %15 {offsets = [0, 0], sizes = [16, 32], strides = [1, 1]} : vector<16x96xf32> to vector<16x32xf32>
    %cst_7 = arith.constant 0.353553385 : f32
    %17 = vector.broadcast %cst_7 : f32 to vector<16x32xf32>
    %18 = arith.mulf %16, %17 : vector<16x32xf32>
    %19 = vector.extract_strided_slice %15 {offsets = [0, 32], sizes = [16, 32], strides = [1, 1]} : vector<16x96xf32> to vector<16x32xf32>
    %20 = vector.extract_strided_slice %15 {offsets = [0, 64], sizes = [16, 32], strides = [1, 1]} : vector<16x96xf32> to vector<16x32xf32>
    %21 = vector.extract_strided_slice %18 {offsets = [0, 0], sizes = [16, 8], strides = [1, 1]} : vector<16x32xf32> to vector<16x8xf32>
    %22 = vector.shape_cast %21 : vector<16x8xf32> to vector<2x8x8xf32>
    %23 = vector.extract_strided_slice %19 {offsets = [0, 0], sizes = [16, 8], strides = [1, 1]} : vector<16x32xf32> to vector<16x8xf32>
    %24 = vector.shape_cast %23 : vector<16x8xf32> to vector<2x8x8xf32>
    %25 = vector.extract_strided_slice %20 {offsets = [0, 0], sizes = [16, 8], strides = [1, 1]} : vector<16x32xf32> to vector<16x8xf32>
    %26 = vector.shape_cast %25 : vector<16x8xf32> to vector<2x8x8xf32>
    "tpu.trace_start"() <{level = 10 : i32, message = "bqd,bkd->bqk"}> : () -> ()
    %cst_8 = arith.constant dense<0.000000e+00> : vector<2x8x8xf32>
    %27 = tpu.matmul %22, %24, %cst_8 {dimension_numbers = #tpu.dot_dimension_numbers<[2], [2], [1], [1], [0, 0, 0, 1, 1, 1], [0], [0]>} : vector<2x8x8xf32>, vector<2x8x8xf32>, vector<2x8x8xf32> -> vector<2x8x8xf32>
    "tpu.trace_stop"() : () -> ()
    %cst_9 = arith.constant dense<0xFF800000> : vector<2x8xf32>
    %28 = vector.multi_reduction <maximumf>, %27, %cst_9 [2] : vector<2x8x8xf32> to vector<2x8xf32>
    %29 = vector.shape_cast %28 : vector<2x8xf32> to vector<2x8x1xf32>
    %30 = vector.broadcast %29 : vector<2x8x1xf32> to vector<2x8x8xf32>
    %31 = arith.subf %27, %30 : vector<2x8x8xf32>
    %32 = math.exp %31 : vector<2x8x8xf32>
    %cst_10 = arith.constant dense<0.000000e+00> : vector<2x8xf32>
    %33 = vector.multi_reduction <add>, %32, %cst_10 [2] : vector<2x8x8xf32> to vector<2x8xf32>
    %34 = vector.shape_cast %33 : vector<2x8xf32> to vector<2x8x1xf32>
    %cst_11 = arith.constant 1.000000e+00 : f32
    %35 = vector.broadcast %cst_11 : f32 to vector<2x8x1xf32>
    %36 = arith.divf %35, %34 : vector<2x8x1xf32>
    %37 = vector.broadcast %36 : vector<2x8x1xf32> to vector<2x8x8xf32>
    %38 = arith.mulf %32, %37 : vector<2x8x8xf32>
    %39 = vector.shape_cast %38 : vector<2x8x8xf32> to vector<16x8xf32>
    "tpu.trace_start"() <{level = 10 : i32, message = "bqk,bkd->bqd"}> : () -> ()
    %cst_12 = arith.constant dense<0.000000e+00> : vector<2x8x8xf32>
    %40 = tpu.matmul %38, %26, %cst_12 {dimension_numbers = #tpu.dot_dimension_numbers<[2], [1], [1], [2], [0, 0, 0, 1, 1, 2], [0], [0]>} : vector<2x8x8xf32>, vector<2x8x8xf32>, vector<2x8x8xf32> -> vector<2x8x8xf32>
    "tpu.trace_stop"() : () -> ()
    %41 = vector.shape_cast %40 : vector<2x8x8xf32> to vector<16x8xf32>
    %42 = vector.extract_strided_slice %18 {offsets = [0, 8], sizes = [16, 8], strides = [1, 1]} : vector<16x32xf32> to vector<16x8xf32>
    %43 = vector.shape_cast %42 : vector<16x8xf32> to vector<2x8x8xf32>
    %44 = vector.extract_strided_slice %19 {offsets = [0, 8], sizes = [16, 8], strides = [1, 1]} : vector<16x32xf32> to vector<16x8xf32>
    %45 = vector.shape_cast %44 : vector<16x8xf32> to vector<2x8x8xf32>
    %46 = vector.extract_strided_slice %20 {offsets = [0, 8], sizes = [16, 8], strides = [1, 1]} : vector<16x32xf32> to vector<16x8xf32>
    %47 = vector.shape_cast %46 : vector<16x8xf32> to vector<2x8x8xf32>
    "tpu.trace_start"() <{level = 10 : i32, message = "bqd,bkd->bqk"}> : () -> ()
    %cst_13 = arith.constant dense<0.000000e+00> : vector<2x8x8xf32>
    %48 = tpu.matmul %43, %45, %cst_13 {dimension_numbers = #tpu.dot_dimension_numbers<[2], [2], [1], [1], [0, 0, 0, 1, 1, 1], [0], [0]>} : vector<2x8x8xf32>, vector<2x8x8xf32>, vector<2x8x8xf32> -> vector<2x8x8xf32>
    "tpu.trace_stop"() : () -> ()
    %cst_14 = arith.constant dense<0xFF800000> : vector<2x8xf32>
    %49 = vector.multi_reduction <maximumf>, %48, %cst_14 [2] : vector<2x8x8xf32> to vector<2x8xf32>
    %50 = vector.shape_cast %49 : vector<2x8xf32> to vector<2x8x1xf32>
    %51 = vector.broadcast %50 : vector<2x8x1xf32> to vector<2x8x8xf32>
    %52 = arith.subf %48, %51 : vector<2x8x8xf32>
    %53 = math.exp %52 : vector<2x8x8xf32>
    %cst_15 = arith.constant dense<0.000000e+00> : vector<2x8xf32>
    %54 = vector.multi_reduction <add>, %53, %cst_15 [2] : vector<2x8x8xf32> to vector<2x8xf32>
    %55 = vector.shape_cast %54 : vector<2x8xf32> to vector<2x8x1xf32>
    %cst_16 = arith.constant 1.000000e+00 : f32
    %56 = vector.broadcast %cst_16 : f32 to vector<2x8x1xf32>
    %57 = arith.divf %56, %55 : vector<2x8x1xf32>
    %58 = vector.broadcast %57 : vector<2x8x1xf32> to vector<2x8x8xf32>
    %59 = arith.mulf %53, %58 : vector<2x8x8xf32>
    %60 = vector.shape_cast %59 : vector<2x8x8xf32> to vector<16x8xf32>
    "tpu.trace_start"() <{level = 10 : i32, message = "bqk,bkd->bqd"}> : () -> ()
    %cst_17 = arith.constant dense<0.000000e+00> : vector<2x8x8xf32>
    %61 = tpu.matmul %59, %47, %cst_17 {dimension_numbers = #tpu.dot_dimension_numbers<[2], [1], [1], [2], [0, 0, 0, 1, 1, 2], [0], [0]>} : vector<2x8x8xf32>, vector<2x8x8xf32>, vector<2x8x8xf32> -> vector<2x8x8xf32>
    "tpu.trace_stop"() : () -> ()
    %62 = vector.shape_cast %61 : vector<2x8x8xf32> to vector<16x8xf32>
    %63 = vector.extract_strided_slice %18 {offsets = [0, 16], sizes = [16, 8], strides = [1, 1]} : vector<16x32xf32> to vector<16x8xf32>
    %64 = vector.shape_cast %63 : vector<16x8xf32> to vector<2x8x8xf32>
    %65 = vector.extract_strided_slice %19 {offsets = [0, 16], sizes = [16, 8], strides = [1, 1]} : vector<16x32xf32> to vector<16x8xf32>
    %66 = vector.shape_cast %65 : vector<16x8xf32> to vector<2x8x8xf32>
    %67 = vector.extract_strided_slice %20 {offsets = [0, 16], sizes = [16, 8], strides = [1, 1]} : vector<16x32xf32> to vector<16x8xf32>
    %68 = vector.shape_cast %67 : vector<16x8xf32> to vector<2x8x8xf32>
    "tpu.trace_start"() <{level = 10 : i32, message = "bqd,bkd->bqk"}> : () -> ()
    %cst_18 = arith.constant dense<0.000000e+00> : vector<2x8x8xf32>
    %69 = tpu.matmul %64, %66, %cst_18 {dimension_numbers = #tpu.dot_dimension_numbers<[2], [2], [1], [1], [0, 0, 0, 1, 1, 1], [0], [0]>} : vector<2x8x8xf32>, vector<2x8x8xf32>, vector<2x8x8xf32> -> vector<2x8x8xf32>
    "tpu.trace_stop"() : () -> ()
    %cst_19 = arith.constant dense<0xFF800000> : vector<2x8xf32>
    %70 = vector.multi_reduction <maximumf>, %69, %cst_19 [2] : vector<2x8x8xf32> to vector<2x8xf32>
    %71 = vector.shape_cast %70 : vector<2x8xf32> to vector<2x8x1xf32>
    %72 = vector.broadcast %71 : vector<2x8x1xf32> to vector<2x8x8xf32>
    %73 = arith.subf %69, %72 : vector<2x8x8xf32>
    %74 = math.exp %73 : vector<2x8x8xf32>
    %cst_20 = arith.constant dense<0.000000e+00> : vector<2x8xf32>
    %75 = vector.multi_reduction <add>, %74, %cst_20 [2] : vector<2x8x8xf32> to vector<2x8xf32>
    %76 = vector.shape_cast %75 : vector<2x8xf32> to vector<2x8x1xf32>
    %cst_21 = arith.constant 1.000000e+00 : f32
    %77 = vector.broadcast %cst_21 : f32 to vector<2x8x1xf32>
    %78 = arith.divf %77, %76 : vector<2x8x1xf32>
    %79 = vector.broadcast %78 : vector<2x8x1xf32> to vector<2x8x8xf32>
    %80 = arith.mulf %74, %79 : vector<2x8x8xf32>
    %81 = vector.shape_cast %80 : vector<2x8x8xf32> to vector<16x8xf32>
    "tpu.trace_start"() <{level = 10 : i32, message = "bqk,bkd->bqd"}> : () -> ()
    %cst_22 = arith.constant dense<0.000000e+00> : vector<2x8x8xf32>
    %82 = tpu.matmul %80, %68, %cst_22 {dimension_numbers = #tpu.dot_dimension_numbers<[2], [1], [1], [2], [0, 0, 0, 1, 1, 2], [0], [0]>} : vector<2x8x8xf32>, vector<2x8x8xf32>, vector<2x8x8xf32> -> vector<2x8x8xf32>
    "tpu.trace_stop"() : () -> ()
    %83 = vector.shape_cast %82 : vector<2x8x8xf32> to vector<16x8xf32>
    %84 = vector.extract_strided_slice %18 {offsets = [0, 24], sizes = [16, 8], strides = [1, 1]} : vector<16x32xf32> to vector<16x8xf32>
    %85 = vector.shape_cast %84 : vector<16x8xf32> to vector<2x8x8xf32>
    %86 = vector.extract_strided_slice %19 {offsets = [0, 24], sizes = [16, 8], strides = [1, 1]} : vector<16x32xf32> to vector<16x8xf32>
    %87 = vector.shape_cast %86 : vector<16x8xf32> to vector<2x8x8xf32>
    %88 = vector.extract_strided_slice %20 {offsets = [0, 24], sizes = [16, 8], strides = [1, 1]} : vector<16x32xf32> to vector<16x8xf32>
    %89 = vector.shape_cast %88 : vector<16x8xf32> to vector<2x8x8xf32>
    "tpu.trace_start"() <{level = 10 : i32, message = "bqd,bkd->bqk"}> : () -> ()
    %cst_23 = arith.constant dense<0.000000e+00> : vector<2x8x8xf32>
    %90 = tpu.matmul %85, %87, %cst_23 {dimension_numbers = #tpu.dot_dimension_numbers<[2], [2], [1], [1], [0, 0, 0, 1, 1, 1], [0], [0]>} : vector<2x8x8xf32>, vector<2x8x8xf32>, vector<2x8x8xf32> -> vector<2x8x8xf32>
    "tpu.trace_stop"() : () -> ()
    %cst_24 = arith.constant dense<0xFF800000> : vector<2x8xf32>
    %91 = vector.multi_reduction <maximumf>, %90, %cst_24 [2] : vector<2x8x8xf32> to vector<2x8xf32>
    %92 = vector.shape_cast %91 : vector<2x8xf32> to vector<2x8x1xf32>
    %93 = vector.broadcast %92 : vector<2x8x1xf32> to vector<2x8x8xf32>
    %94 = arith.subf %90, %93 : vector<2x8x8xf32>
    %95 = math.exp %94 : vector<2x8x8xf32>
    %cst_25 = arith.constant dense<0.000000e+00> : vector<2x8xf32>
    %96 = vector.multi_reduction <add>, %95, %cst_25 [2] : vector<2x8x8xf32> to vector<2x8xf32>
    %97 = vector.shape_cast %96 : vector<2x8xf32> to vector<2x8x1xf32>
    %cst_26 = arith.constant 1.000000e+00 : f32
    %98 = vector.broadcast %cst_26 : f32 to vector<2x8x1xf32>
    %99 = arith.divf %98, %97 : vector<2x8x1xf32>
    %100 = vector.broadcast %99 : vector<2x8x1xf32> to vector<2x8x8xf32>
    %101 = arith.mulf %95, %100 : vector<2x8x8xf32>
    %102 = vector.shape_cast %101 : vector<2x8x8xf32> to vector<16x8xf32>
    "tpu.trace_start"() <{level = 10 : i32, message = "bqk,bkd->bqd"}> : () -> ()
    %cst_27 = arith.constant dense<0.000000e+00> : vector<2x8x8xf32>
    %103 = tpu.matmul %101, %89, %cst_27 {dimension_numbers = #tpu.dot_dimension_numbers<[2], [1], [1], [2], [0, 0, 0, 1, 1, 2], [0], [0]>} : vector<2x8x8xf32>, vector<2x8x8xf32>, vector<2x8x8xf32> -> vector<2x8x8xf32>
    "tpu.trace_stop"() : () -> ()
    %104 = vector.shape_cast %103 : vector<2x8x8xf32> to vector<16x8xf32>
    %105 = tpu.concatenate %39, %60, %81, %102 in 1 : vector<16x8xf32>, vector<16x8xf32>, vector<16x8xf32>, vector<16x8xf32> -> vector<16x32xf32>
    %c0_28 = arith.constant 0 : index
    %c0_29 = arith.constant 0 : index
    %c0_30 = arith.constant 0 : index
    %106 = vector.load %arg7[%c0_28, %c0_29, %c0_30] : memref<2x16x32xf32, #tpu.memory_space<vmem>>, vector<1x16x32xf32>
    %107 = vector.shape_cast %106 : vector<1x16x32xf32> to vector<16x32xf32>
    %108 = vector.shape_cast %105 : vector<16x32xf32> to vector<1x16x32xf32>
    tpu.vector_store %arg7[%c0_28, %c0_29, %c0_30], %108 {strides = array<i32>} : memref<2x16x32xf32, #tpu.memory_space<vmem>>, vector<1x16x32xf32>,
    %109 = tpu.concatenate %41, %62, %83, %104 in 1 : vector<16x8xf32>, vector<16x8xf32>, vector<16x8xf32>, vector<16x8xf32> -> vector<16x32xf32>
    %c0_31 = arith.constant 0 : index
    %c0_32 = arith.constant 0 : index
    %c0_33 = arith.constant 0 : index
    %110 = vector.load %arg2[%c0_31, %c0_32, %c0_33] : memref<2x32x32xf32, #tpu.memory_space<vmem>>, vector<1x32x32xf32>
    %111 = vector.shape_cast %110 : vector<1x32x32xf32> to vector<32x32xf32>
    %cst_34 = arith.constant dense<0.000000e+00> : vector<16x32xf32>
    %112 = tpu.matmul %109, %111, %cst_34 {dimension_numbers = #tpu.dot_dimension_numbers<[1], [0], [0], [1], [0, 0, 1, 1], [], []>} : vector<16x32xf32>, vector<32x32xf32>, vector<16x32xf32> -> vector<16x32xf32>
    %113 = vector.broadcast %6 : vector<1x32xf32> to vector<16x32xf32>
    %114 = arith.addf %112, %113 : vector<16x32xf32>
    %115 = arith.addf %0, %114 : vector<16x32xf32>
    %cst_35 = arith.constant dense<0.000000e+00> : vector<16xf32>
    %116 = vector.multi_reduction <add>, %115, %cst_35 [1] : vector<16x32xf32> to vector<16xf32>
    %117 = vector.shape_cast %116 : vector<16xf32> to vector<16x1xf32>
    %cst_36 = arith.constant 3.200000e+01 : f32
    %118 = vector.broadcast %cst_36 : f32 to vector<16x1xf32>
    %119 = arith.divf %117, %118 : vector<16x1xf32>
    %120 = vector.broadcast %119 : vector<16x1xf32> to vector<16x32xf32>
    %121 = arith.subf %115, %120 : vector<16x32xf32>
    %122 = arith.mulf %121, %121 : vector<16x32xf32>
    %cst_37 = arith.constant dense<0.000000e+00> : vector<16xf32>
    %123 = vector.multi_reduction <add>, %122, %cst_37 [1] : vector<16x32xf32> to vector<16xf32>
    %124 = vector.shape_cast %123 : vector<16xf32> to vector<16x1xf32>
    %cst_38 = arith.constant 3.200000e+01 : f32
    %125 = vector.broadcast %cst_38 : f32 to vector<16x1xf32>
    %126 = arith.divf %124, %125 : vector<16x1xf32>
    %127 = vector.broadcast %119 : vector<16x1xf32> to vector<16x32xf32>
    %128 = arith.subf %115, %127 : vector<16x32xf32>
    %cst_39 = arith.constant 9.99999974E-6 : f32
    %129 = vector.broadcast %cst_39 : f32 to vector<16x1xf32>
    %130 = arith.addf %126, %129 : vector<16x1xf32>
    %131 = math.rsqrt %130 : vector<16x1xf32>
    %132 = vector.broadcast %131 : vector<16x1xf32> to vector<16x32xf32>
    %133 = arith.mulf %128, %132 : vector<16x32xf32>
    %134 = vector.broadcast %9 : vector<1x32xf32> to vector<16x32xf32>
    %135 = arith.mulf %133, %134 : vector<16x32xf32>
    %136 = vector.broadcast %10 : vector<1x32xf32> to vector<16x32xf32>
    %137 = arith.addf %135, %136 : vector<16x32xf32>
    %c0_40 = arith.constant 0 : index
    %c0_41 = arith.constant 0 : index
    %c0_42 = arith.constant 0 : index
    %138 = vector.load %arg3[%c0_40, %c0_41, %c0_42] : memref<2x32x64xf32, #tpu.memory_space<vmem>>, vector<1x32x64xf32>
    %139 = vector.shape_cast %138 : vector<1x32x64xf32> to vector<32x64xf32>
    %cst_43 = arith.constant dense<0.000000e+00> : vector<16x64xf32>
    %140 = tpu.matmul %137, %139, %cst_43 {dimension_numbers = #tpu.dot_dimension_numbers<[1], [0], [0], [1], [0, 0, 1, 1], [], []>} : vector<16x32xf32>, vector<32x64xf32>, vector<16x64xf32> -> vector<16x64xf32>
    %141 = vector.broadcast %7 : vector<1x64xf32> to vector<16x64xf32>
    %142 = arith.addf %140, %141 : vector<16x64xf32>
    %cst_44 = arith.constant 0.000000e+00 : f32
    %143 = vector.broadcast %cst_44 : f32 to vector<16x64xf32>
    %144 = arith.maximumf %142, %143 : vector<16x64xf32>
    %c0_45 = arith.constant 0 : index
    %c0_46 = arith.constant 0 : index
    %c0_47 = arith.constant 0 : index
    %145 = vector.load %arg4[%c0_45, %c0_46, %c0_47] : memref<2x64x32xf32, #tpu.memory_space<vmem>>, vector<1x64x32xf32>
    %146 = vector.shape_cast %145 : vector<1x64x32xf32> to vector<64x32xf32>
    %cst_48 = arith.constant dense<0.000000e+00> : vector<16x32xf32>
    %147 = tpu.matmul %144, %146, %cst_48 {dimension_numbers = #tpu.dot_dimension_numbers<[1], [0], [0], [1], [0, 0, 1, 1], [], []>} : vector<16x64xf32>, vector<64x32xf32>, vector<16x32xf32> -> vector<16x32xf32>
    %148 = vector.broadcast %8 : vector<1x32xf32> to vector<16x32xf32>
    %149 = arith.addf %147, %148 : vector<16x32xf32>
    %150 = arith.addf %137, %149 : vector<16x32xf32>
    %cst_49 = arith.constant dense<0.000000e+00> : vector<16xf32>
    %151 = vector.multi_reduction <add>, %150, %cst_49 [1] : vector<16x32xf32> to vector<16xf32>
    %152 = vector.shape_cast %151 : vector<16xf32> to vector<16x1xf32>
    %cst_50 = arith.constant 3.200000e+01 : f32
    %153 = vector.broadcast %cst_50 : f32 to vector<16x1xf32>
    %154 = arith.divf %152, %153 : vector<16x1xf32>
    %155 = vector.broadcast %154 : vector<16x1xf32> to vector<16x32xf32>
    %156 = arith.subf %150, %155 : vector<16x32xf32>
    %157 = arith.mulf %156, %156 : vector<16x32xf32>
    %cst_51 = arith.constant dense<0.000000e+00> : vector<16xf32>
    %158 = vector.multi_reduction <add>, %157, %cst_51 [1] : vector<16x32xf32> to vector<16xf32>
    %159 = vector.shape_cast %158 : vector<16xf32> to vector<16x1xf32>
    %cst_52 = arith.constant 3.200000e+01 : f32
    %160 = vector.broadcast %cst_52 : f32 to vector<16x1xf32>
    %161 = arith.divf %159, %160 : vector<16x1xf32>
    %162 = vector.broadcast %154 : vector<16x1xf32> to vector<16x32xf32>
    %163 = arith.subf %150, %162 : vector<16x32xf32>
    %cst_53 = arith.constant 9.99999974E-6 : f32
    %164 = vector.broadcast %cst_53 : f32 to vector<16x1xf32>
    %165 = arith.addf %161, %164 : vector<16x1xf32>
    %166 = math.rsqrt %165 : vector<16x1xf32>
    %167 = vector.broadcast %166 : vector<16x1xf32> to vector<16x32xf32>
    %168 = arith.mulf %163, %167 : vector<16x32xf32>
    %169 = vector.broadcast %11 : vector<1x32xf32> to vector<16x32xf32>
    %170 = arith.mulf %168, %169 : vector<16x32xf32>
    %171 = vector.broadcast %12 : vector<1x32xf32> to vector<16x32xf32>
    %172 = arith.addf %170, %171 : vector<16x32xf32>
    %c1 = arith.constant 1 : index
    %c0_54 = arith.constant 0 : index
    %c0_55 = arith.constant 0 : index
    %173 = vector.load %arg1[%c1, %c0_54, %c0_55] : memref<2x32x96xf32, #tpu.memory_space<vmem>>, vector<1x32x96xf32>
    %174 = vector.shape_cast %173 : vector<1x32x96xf32> to vector<32x96xf32>
    %c1_56 = arith.constant 1 : index
    %c0_57 = arith.constant 0 : index
    %c0_58 = arith.constant 0 : index
    %175 = vector.load %arg5[%c1_56, %c0_57, %c0_58] : memref<2x8x128xf32, #tpu.memory_space<vmem>>, vector<1x8x128xf32>
    %176 = vector.shape_cast %175 : vector<1x8x128xf32> to vector<8x128xf32>
    %177 = vector.extract_strided_slice %176 {offsets = [0, 0], sizes = [1, 96], strides = [1, 1]} : vector<8x128xf32> to vector<1x96xf32>
    %178 = vector.extract_strided_slice %176 {offsets = [1, 0], sizes = [1, 32], strides = [1, 1]} : vector<8x128xf32> to vector<1x32xf32>
    %179 = vector.extract_strided_slice %176 {offsets = [2, 0], sizes = [1, 64], strides = [1, 1]} : vector<8x128xf32> to vector<1x64xf32>
    %180 = vector.extract_strided_slice %176 {offsets = [3, 0], sizes = [1, 32], strides = [1, 1]} : vector<8x128xf32> to vector<1x32xf32>
    %181 = vector.extract_strided_slice %176 {offsets = [4, 0], sizes = [1, 32], strides = [1, 1]} : vector<8x128xf32> to vector<1x32xf32>
    %182 = vector.extract_strided_slice %176 {offsets = [5, 0], sizes = [1, 32], strides = [1, 1]} : vector<8x128xf32> to vector<1x32xf32>
    %183 = vector.extract_strided_slice %176 {offsets = [6, 0], sizes = [1, 32], strides = [1, 1]} : vector<8x128xf32> to vector<1x32xf32>
    %184 = vector.extract_strided_slice %176 {offsets = [7, 0], sizes = [1, 32], strides = [1, 1]} : vector<8x128xf32> to vector<1x32xf32>
    %cst_59 = arith.constant dense<0.000000e+00> : vector<16x96xf32>
    %185 = tpu.matmul %172, %174, %cst_59 {dimension_numbers = #tpu.dot_dimension_numbers<[1], [0], [0], [1], [0, 0, 1, 1], [], []>} : vector<16x32xf32>, vector<32x96xf32>, vector<16x96xf32> -> vector<16x96xf32>
    %186 = vector.broadcast %177 : vector<1x96xf32> to vector<16x96xf32>
    %187 = arith.addf %185, %186 : vector<16x96xf32>
    %188 = vector.extract_strided_slice %187 {offsets = [0, 0], sizes = [16, 32], strides = [1, 1]} : vector<16x96xf32> to vector<16x32xf32>
    %cst_60 = arith.constant 0.353553385 : f32
    %189 = vector.broadcast %cst_60 : f32 to vector<16x32xf32>
    %190 = arith.mulf %188, %189 : vector<16x32xf32>
    %191 = vector.extract_strided_slice %187 {offsets = [0, 32], sizes = [16, 32], strides = [1, 1]} : vector<16x96xf32> to vector<16x32xf32>
    %192 = vector.extract_strided_slice %187 {offsets = [0, 64], sizes = [16, 32], strides = [1, 1]} : vector<16x96xf32> to vector<16x32xf32>
    %193 = vector.extract_strided_slice %190 {offsets = [0, 0], sizes = [16, 8], strides = [1, 1]} : vector<16x32xf32> to vector<16x8xf32>
    %194 = vector.shape_cast %193 : vector<16x8xf32> to vector<2x8x8xf32>
    %195 = vector.extract_strided_slice %191 {offsets = [0, 0], sizes = [16, 8], strides = [1, 1]} : vector<16x32xf32> to vector<16x8xf32>
    %196 = vector.shape_cast %195 : vector<16x8xf32> to vector<2x8x8xf32>
    %197 = vector.extract_strided_slice %192 {offsets = [0, 0], sizes = [16, 8], strides = [1, 1]} : vector<16x32xf32> to vector<16x8xf32>
    %198 = vector.shape_cast %197 : vector<16x8xf32> to vector<2x8x8xf32>
    "tpu.trace_start"() <{level = 10 : i32, message = "bqd,bkd->bqk"}> : () -> ()
    %cst_61 = arith.constant dense<0.000000e+00> : vector<2x8x8xf32>
    %199 = tpu.matmul %194, %196, %cst_61 {dimension_numbers = #tpu.dot_dimension_numbers<[2], [2], [1], [1], [0, 0, 0, 1, 1, 1], [0], [0]>} : vector<2x8x8xf32>, vector<2x8x8xf32>, vector<2x8x8xf32> -> vector<2x8x8xf32>
    "tpu.trace_stop"() : () -> ()
    %cst_62 = arith.constant dense<0xFF800000> : vector<2x8xf32>
    %200 = vector.multi_reduction <maximumf>, %199, %cst_62 [2] : vector<2x8x8xf32> to vector<2x8xf32>
    %201 = vector.shape_cast %200 : vector<2x8xf32> to vector<2x8x1xf32>
    %202 = vector.broadcast %201 : vector<2x8x1xf32> to vector<2x8x8xf32>
    %203 = arith.subf %199, %202 : vector<2x8x8xf32>
    %204 = math.exp %203 : vector<2x8x8xf32>
    %cst_63 = arith.constant dense<0.000000e+00> : vector<2x8xf32>
    %205 = vector.multi_reduction <add>, %204, %cst_63 [2] : vector<2x8x8xf32> to vector<2x8xf32>
    %206 = vector.shape_cast %205 : vector<2x8xf32> to vector<2x8x1xf32>
    %cst_64 = arith.constant 1.000000e+00 : f32
    %207 = vector.broadcast %cst_64 : f32 to vector<2x8x1xf32>
    %208 = arith.divf %207, %206 : vector<2x8x1xf32>
    %209 = vector.broadcast %208 : vector<2x8x1xf32> to vector<2x8x8xf32>
    %210 = arith.mulf %204, %209 : vector<2x8x8xf32>
    %211 = vector.shape_cast %210 : vector<2x8x8xf32> to vector<16x8xf32>
    "tpu.trace_start"() <{level = 10 : i32, message = "bqk,bkd->bqd"}> : () -> ()
    %cst_65 = arith.constant dense<0.000000e+00> : vector<2x8x8xf32>
    %212 = tpu.matmul %210, %198, %cst_65 {dimension_numbers = #tpu.dot_dimension_numbers<[2], [1], [1], [2], [0, 0, 0, 1, 1, 2], [0], [0]>} : vector<2x8x8xf32>, vector<2x8x8xf32>, vector<2x8x8xf32> -> vector<2x8x8xf32>
    "tpu.trace_stop"() : () -> ()
    %213 = vector.shape_cast %212 : vector<2x8x8xf32> to vector<16x8xf32>
    %214 = vector.extract_strided_slice %190 {offsets = [0, 8], sizes = [16, 8], strides = [1, 1]} : vector<16x32xf32> to vector<16x8xf32>
    %215 = vector.shape_cast %214 : vector<16x8xf32> to vector<2x8x8xf32>
    %216 = vector.extract_strided_slice %191 {offsets = [0, 8], sizes = [16, 8], strides = [1, 1]} : vector<16x32xf32> to vector<16x8xf32>
    %217 = vector.shape_cast %216 : vector<16x8xf32> to vector<2x8x8xf32>
    %218 = vector.extract_strided_slice %192 {offsets = [0, 8], sizes = [16, 8], strides = [1, 1]} : vector<16x32xf32> to vector<16x8xf32>
    %219 = vector.shape_cast %218 : vector<16x8xf32> to vector<2x8x8xf32>
    "tpu.trace_start"() <{level = 10 : i32, message = "bqd,bkd->bqk"}> : () -> ()
    %cst_66 = arith.constant dense<0.000000e+00> : vector<2x8x8xf32>
    %220 = tpu.matmul %215, %217, %cst_66 {dimension_numbers = #tpu.dot_dimension_numbers<[2], [2], [1], [1], [0, 0, 0, 1, 1, 1], [0], [0]>} : vector<2x8x8xf32>, vector<2x8x8xf32>, vector<2x8x8xf32> -> vector<2x8x8xf32>
    "tpu.trace_stop"() : () -> ()
    %cst_67 = arith.constant dense<0xFF800000> : vector<2x8xf32>
    %221 = vector.multi_reduction <maximumf>, %220, %cst_67 [2] : vector<2x8x8xf32> to vector<2x8xf32>
    %222 = vector.shape_cast %221 : vector<2x8xf32> to vector<2x8x1xf32>
    %223 = vector.broadcast %222 : vector<2x8x1xf32> to vector<2x8x8xf32>
    %224 = arith.subf %220, %223 : vector<2x8x8xf32>
    %225 = math.exp %224 : vector<2x8x8xf32>
    %cst_68 = arith.constant dense<0.000000e+00> : vector<2x8xf32>
    %226 = vector.multi_reduction <add>, %225, %cst_68 [2] : vector<2x8x8xf32> to vector<2x8xf32>
    %227 = vector.shape_cast %226 : vector<2x8xf32> to vector<2x8x1xf32>
    %cst_69 = arith.constant 1.000000e+00 : f32
    %228 = vector.broadcast %cst_69 : f32 to vector<2x8x1xf32>
    %229 = arith.divf %228, %227 : vector<2x8x1xf32>
    %230 = vector.broadcast %229 : vector<2x8x1xf32> to vector<2x8x8xf32>
    %231 = arith.mulf %225, %230 : vector<2x8x8xf32>
    %232 = vector.shape_cast %231 : vector<2x8x8xf32> to vector<16x8xf32>
    "tpu.trace_start"() <{level = 10 : i32, message = "bqk,bkd->bqd"}> : () -> ()
    %cst_70 = arith.constant dense<0.000000e+00> : vector<2x8x8xf32>
    %233 = tpu.matmul %231, %219, %cst_70 {dimension_numbers = #tpu.dot_dimension_numbers<[2], [1], [1], [2], [0, 0, 0, 1, 1, 2], [0], [0]>} : vector<2x8x8xf32>, vector<2x8x8xf32>, vector<2x8x8xf32> -> vector<2x8x8xf32>
    "tpu.trace_stop"() : () -> ()
    %234 = vector.shape_cast %233 : vector<2x8x8xf32> to vector<16x8xf32>
    %235 = vector.extract_strided_slice %190 {offsets = [0, 16], sizes = [16, 8], strides = [1, 1]} : vector<16x32xf32> to vector<16x8xf32>
    %236 = vector.shape_cast %235 : vector<16x8xf32> to vector<2x8x8xf32>
    %237 = vector.extract_strided_slice %191 {offsets = [0, 16], sizes = [16, 8], strides = [1, 1]} : vector<16x32xf32> to vector<16x8xf32>
    %238 = vector.shape_cast %237 : vector<16x8xf32> to vector<2x8x8xf32>
    %239 = vector.extract_strided_slice %192 {offsets = [0, 16], sizes = [16, 8], strides = [1, 1]} : vector<16x32xf32> to vector<16x8xf32>
    %240 = vector.shape_cast %239 : vector<16x8xf32> to vector<2x8x8xf32>
    "tpu.trace_start"() <{level = 10 : i32, message = "bqd,bkd->bqk"}> : () -> ()
    %cst_71 = arith.constant dense<0.000000e+00> : vector<2x8x8xf32>
    %241 = tpu.matmul %236, %238, %cst_71 {dimension_numbers = #tpu.dot_dimension_numbers<[2], [2], [1], [1], [0, 0, 0, 1, 1, 1], [0], [0]>} : vector<2x8x8xf32>, vector<2x8x8xf32>, vector<2x8x8xf32> -> vector<2x8x8xf32>
    "tpu.trace_stop"() : () -> ()
    %cst_72 = arith.constant dense<0xFF800000> : vector<2x8xf32>
    %242 = vector.multi_reduction <maximumf>, %241, %cst_72 [2] : vector<2x8x8xf32> to vector<2x8xf32>
    %243 = vector.shape_cast %242 : vector<2x8xf32> to vector<2x8x1xf32>
    %244 = vector.broadcast %243 : vector<2x8x1xf32> to vector<2x8x8xf32>
    %245 = arith.subf %241, %244 : vector<2x8x8xf32>
    %246 = math.exp %245 : vector<2x8x8xf32>
    %cst_73 = arith.constant dense<0.000000e+00> : vector<2x8xf32>
    %247 = vector.multi_reduction <add>, %246, %cst_73 [2] : vector<2x8x8xf32> to vector<2x8xf32>
    %248 = vector.shape_cast %247 : vector<2x8xf32> to vector<2x8x1xf32>
    %cst_74 = arith.constant 1.000000e+00 : f32
    %249 = vector.broadcast %cst_74 : f32 to vector<2x8x1xf32>
    %250 = arith.divf %249, %248 : vector<2x8x1xf32>
    %251 = vector.broadcast %250 : vector<2x8x1xf32> to vector<2x8x8xf32>
    %252 = arith.mulf %246, %251 : vector<2x8x8xf32>
    %253 = vector.shape_cast %252 : vector<2x8x8xf32> to vector<16x8xf32>
    "tpu.trace_start"() <{level = 10 : i32, message = "bqk,bkd->bqd"}> : () -> ()
    %cst_75 = arith.constant dense<0.000000e+00> : vector<2x8x8xf32>
    %254 = tpu.matmul %252, %240, %cst_75 {dimension_numbers = #tpu.dot_dimension_numbers<[2], [1], [1], [2], [0, 0, 0, 1, 1, 2], [0], [0]>} : vector<2x8x8xf32>, vector<2x8x8xf32>, vector<2x8x8xf32> -> vector<2x8x8xf32>
    "tpu.trace_stop"() : () -> ()
    %255 = vector.shape_cast %254 : vector<2x8x8xf32> to vector<16x8xf32>
    %256 = vector.extract_strided_slice %190 {offsets = [0, 24], sizes = [16, 8], strides = [1, 1]} : vector<16x32xf32> to vector<16x8xf32>
    %257 = vector.shape_cast %256 : vector<16x8xf32> to vector<2x8x8xf32>
    %258 = vector.extract_strided_slice %191 {offsets = [0, 24], sizes = [16, 8], strides = [1, 1]} : vector<16x32xf32> to vector<16x8xf32>
    %259 = vector.shape_cast %258 : vector<16x8xf32> to vector<2x8x8xf32>
    %260 = vector.extract_strided_slice %192 {offsets = [0, 24], sizes = [16, 8], strides = [1, 1]} : vector<16x32xf32> to vector<16x8xf32>
    %261 = vector.shape_cast %260 : vector<16x8xf32> to vector<2x8x8xf32>
    "tpu.trace_start"() <{level = 10 : i32, message = "bqd,bkd->bqk"}> : () -> ()
    %cst_76 = arith.constant dense<0.000000e+00> : vector<2x8x8xf32>
    %262 = tpu.matmul %257, %259, %cst_76 {dimension_numbers = #tpu.dot_dimension_numbers<[2], [2], [1], [1], [0, 0, 0, 1, 1, 1], [0], [0]>} : vector<2x8x8xf32>, vector<2x8x8xf32>, vector<2x8x8xf32> -> vector<2x8x8xf32>
    "tpu.trace_stop"() : () -> ()
    %cst_77 = arith.constant dense<0xFF800000> : vector<2x8xf32>
    %263 = vector.multi_reduction <maximumf>, %262, %cst_77 [2] : vector<2x8x8xf32> to vector<2x8xf32>
    %264 = vector.shape_cast %263 : vector<2x8xf32> to vector<2x8x1xf32>
    %265 = vector.broadcast %264 : vector<2x8x1xf32> to vector<2x8x8xf32>
    %266 = arith.subf %262, %265 : vector<2x8x8xf32>
    %267 = math.exp %266 : vector<2x8x8xf32>
    %cst_78 = arith.constant dense<0.000000e+00> : vector<2x8xf32>
    %268 = vector.multi_reduction <add>, %267, %cst_78 [2] : vector<2x8x8xf32> to vector<2x8xf32>
    %269 = vector.shape_cast %268 : vector<2x8xf32> to vector<2x8x1xf32>
    %cst_79 = arith.constant 1.000000e+00 : f32
    %270 = vector.broadcast %cst_79 : f32 to vector<2x8x1xf32>
    %271 = arith.divf %270, %269 : vector<2x8x1xf32>
    %272 = vector.broadcast %271 : vector<2x8x1xf32> to vector<2x8x8xf32>
    %273 = arith.mulf %267, %272 : vector<2x8x8xf32>
    %274 = vector.shape_cast %273 : vector<2x8x8xf32> to vector<16x8xf32>
    "tpu.trace_start"() <{level = 10 : i32, message = "bqk,bkd->bqd"}> : () -> ()
    %cst_80 = arith.constant dense<0.000000e+00> : vector<2x8x8xf32>
    %275 = tpu.matmul %273, %261, %cst_80 {dimension_numbers = #tpu.dot_dimension_numbers<[2], [1], [1], [2], [0, 0, 0, 1, 1, 2], [0], [0]>} : vector<2x8x8xf32>, vector<2x8x8xf32>, vector<2x8x8xf32> -> vector<2x8x8xf32>
    "tpu.trace_stop"() : () -> ()
    %276 = vector.shape_cast %275 : vector<2x8x8xf32> to vector<16x8xf32>
    %277 = tpu.concatenate %211, %232, %253, %274 in 1 : vector<16x8xf32>, vector<16x8xf32>, vector<16x8xf32>, vector<16x8xf32> -> vector<16x32xf32>
    %c1_81 = arith.constant 1 : index
    %c0_82 = arith.constant 0 : index
    %c0_83 = arith.constant 0 : index
    %278 = vector.load %arg7[%c1_81, %c0_82, %c0_83] : memref<2x16x32xf32, #tpu.memory_space<vmem>>, vector<1x16x32xf32>
    %279 = vector.shape_cast %278 : vector<1x16x32xf32> to vector<16x32xf32>
    %280 = vector.shape_cast %277 : vector<16x32xf32> to vector<1x16x32xf32>
    tpu.vector_store %arg7[%c1_81, %c0_82, %c0_83], %280 {strides = array<i32>} : memref<2x16x32xf32, #tpu.memory_space<vmem>>, vector<1x16x32xf32>,
    %281 = tpu.concatenate %213, %234, %255, %276 in 1 : vector<16x8xf32>, vector<16x8xf32>, vector<16x8xf32>, vector<16x8xf32> -> vector<16x32xf32>
    %c1_84 = arith.constant 1 : index
    %c0_85 = arith.constant 0 : index
    %c0_86 = arith.constant 0 : index
    %282 = vector.load %arg2[%c1_84, %c0_85, %c0_86] : memref<2x32x32xf32, #tpu.memory_space<vmem>>, vector<1x32x32xf32>
    %283 = vector.shape_cast %282 : vector<1x32x32xf32> to vector<32x32xf32>
    %cst_87 = arith.constant dense<0.000000e+00> : vector<16x32xf32>
    %284 = tpu.matmul %281, %283, %cst_87 {dimension_numbers = #tpu.dot_dimension_numbers<[1], [0], [0], [1], [0, 0, 1, 1], [], []>} : vector<16x32xf32>, vector<32x32xf32>, vector<16x32xf32> -> vector<16x32xf32>
    %285 = vector.broadcast %178 : vector<1x32xf32> to vector<16x32xf32>
    %286 = arith.addf %284, %285 : vector<16x32xf32>
    %287 = arith.addf %172, %286 : vector<16x32xf32>
    %cst_88 = arith.constant dense<0.000000e+00> : vector<16xf32>
    %288 = vector.multi_reduction <add>, %287, %cst_88 [1] : vector<16x32xf32> to vector<16xf32>
    %289 = vector.shape_cast %288 : vector<16xf32> to vector<16x1xf32>
    %cst_89 = arith.constant 3.200000e+01 : f32
    %290 = vector.broadcast %cst_89 : f32 to vector<16x1xf32>
    %291 = arith.divf %289, %290 : vector<16x1xf32>
    %292 = vector.broadcast %291 : vector<16x1xf32> to vector<16x32xf32>
    %293 = arith.subf %287, %292 : vector<16x32xf32>
    %294 = arith.mulf %293, %293 : vector<16x32xf32>
    %cst_90 = arith.constant dense<0.000000e+00> : vector<16xf32>
    %295 = vector.multi_reduction <add>, %294, %cst_90 [1] : vector<16x32xf32> to vector<16xf32>
    %296 = vector.shape_cast %295 : vector<16xf32> to vector<16x1xf32>
    %cst_91 = arith.constant 3.200000e+01 : f32
    %297 = vector.broadcast %cst_91 : f32 to vector<16x1xf32>
    %298 = arith.divf %296, %297 : vector<16x1xf32>
    %299 = vector.broadcast %291 : vector<16x1xf32> to vector<16x32xf32>
    %300 = arith.subf %287, %299 : vector<16x32xf32>
    %cst_92 = arith.constant 9.99999974E-6 : f32
    %301 = vector.broadcast %cst_92 : f32 to vector<16x1xf32>
    %302 = arith.addf %298, %301 : vector<16x1xf32>
    %303 = math.rsqrt %302 : vector<16x1xf32>
    %304 = vector.broadcast %303 : vector<16x1xf32> to vector<16x32xf32>
    %305 = arith.mulf %300, %304 : vector<16x32xf32>
    %306 = vector.broadcast %181 : vector<1x32xf32> to vector<16x32xf32>
    %307 = arith.mulf %305, %306 : vector<16x32xf32>
    %308 = vector.broadcast %182 : vector<1x32xf32> to vector<16x32xf32>
    %309 = arith.addf %307, %308 : vector<16x32xf32>
    %c1_93 = arith.constant 1 : index
    %c0_94 = arith.constant 0 : index
    %c0_95 = arith.constant 0 : index
    %310 = vector.load %arg3[%c1_93, %c0_94, %c0_95] : memref<2x32x64xf32, #tpu.memory_space<vmem>>, vector<1x32x64xf32>
    %311 = vector.shape_cast %310 : vector<1x32x64xf32> to vector<32x64xf32>
    %cst_96 = arith.constant dense<0.000000e+00> : vector<16x64xf32>
    %312 = tpu.matmul %309, %311, %cst_96 {dimension_numbers = #tpu.dot_dimension_numbers<[1], [0], [0], [1], [0, 0, 1, 1], [], []>} : vector<16x32xf32>, vector<32x64xf32>, vector<16x64xf32> -> vector<16x64xf32>
    %313 = vector.broadcast %179 : vector<1x64xf32> to vector<16x64xf32>
    %314 = arith.addf %312, %313 : vector<16x64xf32>
    %cst_97 = arith.constant 0.000000e+00 : f32
    %315 = vector.broadcast %cst_97 : f32 to vector<16x64xf32>
    %316 = arith.maximumf %314, %315 : vector<16x64xf32>
    %c1_98 = arith.constant 1 : index
    %c0_99 = arith.constant 0 : index
    %c0_100 = arith.constant 0 : index
    %317 = vector.load %arg4[%c1_98, %c0_99, %c0_100] : memref<2x64x32xf32, #tpu.memory_space<vmem>>, vector<1x64x32xf32>
    %318 = vector.shape_cast %317 : vector<1x64x32xf32> to vector<64x32xf32>
    %cst_101 = arith.constant dense<0.000000e+00> : vector<16x32xf32>
    %319 = tpu.matmul %316, %318, %cst_101 {dimension_numbers = #tpu.dot_dimension_numbers<[1], [0], [0], [1], [0, 0, 1, 1], [], []>} : vector<16x64xf32>, vector<64x32xf32>, vector<16x32xf32> -> vector<16x32xf32>
    %320 = vector.broadcast %180 : vector<1x32xf32> to vector<16x32xf32>
    %321 = arith.addf %319, %320 : vector<16x32xf32>
    %322 = arith.addf %309, %321 : vector<16x32xf32>
    %cst_102 = arith.constant dense<0.000000e+00> : vector<16xf32>
    %323 = vector.multi_reduction <add>, %322, %cst_102 [1] : vector<16x32xf32> to vector<16xf32>
    %324 = vector.shape_cast %323 : vector<16xf32> to vector<16x1xf32>
    %cst_103 = arith.constant 3.200000e+01 : f32
    %325 = vector.broadcast %cst_103 : f32 to vector<16x1xf32>
    %326 = arith.divf %324, %325 : vector<16x1xf32>
    %327 = vector.broadcast %326 : vector<16x1xf32> to vector<16x32xf32>
    %328 = arith.subf %322, %327 : vector<16x32xf32>
    %329 = arith.mulf %328, %328 : vector<16x32xf32>
    %cst_104 = arith.constant dense<0.000000e+00> : vector<16xf32>
    %330 = vector.multi_reduction <add>, %329, %cst_104 [1] : vector<16x32xf32> to vector<16xf32>
    %331 = vector.shape_cast %330 : vector<16xf32> to vector<16x1xf32>
    %cst_105 = arith.constant 3.200000e+01 : f32
    %332 = vector.broadcast %cst_105 : f32 to vector<16x1xf32>
    %333 = arith.divf %331, %332 : vector<16x1xf32>
    %334 = vector.broadcast %326 : vector<16x1xf32> to vector<16x32xf32>
    %335 = arith.subf %322, %334 : vector<16x32xf32>
    %cst_106 = arith.constant 9.99999974E-6 : f32
    %336 = vector.broadcast %cst_106 : f32 to vector<16x1xf32>
    %337 = arith.addf %333, %336 : vector<16x1xf32>
    %338 = math.rsqrt %337 : vector<16x1xf32>
    %339 = vector.broadcast %338 : vector<16x1xf32> to vector<16x32xf32>
    %340 = arith.mulf %335, %339 : vector<16x32xf32>
    %341 = vector.broadcast %183 : vector<1x32xf32> to vector<16x32xf32>
    %342 = arith.mulf %340, %341 : vector<16x32xf32>
    %343 = vector.broadcast %184 : vector<1x32xf32> to vector<16x32xf32>
    %344 = arith.addf %342, %343 : vector<16x32xf32>
    %c0_107 = arith.constant 0 : index
    %c0_108 = arith.constant 0 : index
    %345 = vector.load %arg6[%c0_107, %c0_108] : memref<16x32xf32, #tpu.memory_space<vmem>>, vector<16x32xf32>
    tpu.vector_store %arg6[%c0_107, %c0_108], %344 {strides = array<i32>} : memref<16x32xf32, #tpu.memory_space<vmem>>, vector<16x32xf32>,
    return
  }
}

</mosaic_0001>

<llo_original>
// kernel: _encoder_call.1
$region0: #{_encoder_call.1}
  #allocation0 [shape = 'u32[]', space=smem, size = 0x4, offset = 0x4, fixed_abs, tag = 'smem constant byte address 0x4 - core index']
  #allocation1 [shape = 'u32[72,128]{1,0:T(1,128)}', space=vmem, size = 0x9000, scoped, tag = 'internal scratch']
  %s0 = inlined_call_operand.hbm [shape: f32[16,32], index: 0, kind: input, shape index: {}]
  %s1 = inlined_call_operand.vmem [shape: f32[2,32,96], index: 1, kind: input, shape index: {}]
  %s2 = inlined_call_operand.vmem [shape: f32[2,32,32], index: 2, kind: input, shape index: {}]
  %s3 = inlined_call_operand.vmem [shape: f32[2,32,64], index: 3, kind: input, shape index: {}]
  %s4 = inlined_call_operand.vmem [shape: f32[2,64,32], index: 4, kind: input, shape index: {}]
  %s5 = inlined_call_operand.hbm [shape: f32[2,8,128], index: 5, kind: input, shape index: {}]
  %s6 = inlined_call_operand.hbm [shape: f32[16,32], index: 6, kind: output, shape index: {0}]
  %s7 = inlined_call_operand.vmem [shape: f32[2,16,32], index: 7, kind: output, shape index: {1}]
  %8 = xla_tuple %s6, %s7
  %s9 = sld [smem:[#allocation0]]
  $region50: #{_encoder_call.1} parent=0
    _
  %s11 = ssub.s32 1, %s9
  %s12 = scalar_select 0, %s11, %s9
  $region1: #{_encoder_call.1} parent=0
    #allocation2 [shape = 'u8[8192]{0}', space=vmem, size = 0x2000, scoped, tag = 'input window, operand 0, single buffered']
    #allocation3 [shape = 's32[1]{0}', space=sflag, size = 0x4, scoped, tag = 'scoped memory for _encoder_call.1']
    #allocation4 [shape = 's32[1]{0}', space=sflag, size = 0x4, scoped, tag = 'scoped memory for _encoder_call.1']
    #allocation5 [shape = 'u8[8192]{0}', space=vmem, size = 0x2000, scoped, tag = 'input window, operand 5, single buffered']
    #allocation6 [shape = 's32[1]{0}', space=sflag, size = 0x4, scoped, tag = 'scoped memory for _encoder_call.1']
    #allocation7 [shape = 'u8[8192]{0}', space=vmem, size = 0x2000, scoped, tag = 'output window, operand 0, single buffered']
    %13 = vsyncpa [#allocation3], 0
    %14 = vsyncpa [#allocation6], 0
    %15 = vsyncpa [#allocation4], 0
    // Predicated region
    $region2: #{_encoder_call.1} parent=1 // pred_check
      _
    $region3: #{_encoder_call.1} parent=1 // pred_check_branch
      %17 = sbr.rel (0) target = $region5
    $region4: #{_encoder_call.1} parent=1 // pred_region
      %19 = vsyncadd [#allocation3], 0
      %s20 = sshll.u32 %s0, 4
      %s21 = int_to_ptr.hbm [resolvable:$true] %s20
      %s22 = sshll.u32 [#allocation2], 4
      %s23 = int_to_ptr.vmem [resolvable:$true] %s22
      %28 = dma.hbm_to_vmem [thread:$0]  %s21, 256, %s23, [#allocation3], 128, 128, 8
    $region5: #{_encoder_call.1} parent=1 // pred_fallthru
      _
    // Predicated region
    $region6: #{_encoder_call.1} parent=1 // pred_check
      _
    $region7: #{_encoder_call.1} parent=1 // pred_check_branch
      %30 = sbr.rel (0) target = $region9
    $region8: #{_encoder_call.1} parent=1 // pred_region
      _
    $region9: #{_encoder_call.1} parent=1 // pred_fallthru
      _
    // Predicated region
    $region10: #{_encoder_call.1} parent=1 // pred_check
      _
    $region11: #{_encoder_call.1} parent=1 // pred_check_branch
      %32 = sbr.rel (0) target = $region13
    $region12: #{_encoder_call.1} parent=1 // pred_region
      _
    $region13: #{_encoder_call.1} parent=1 // pred_fallthru
      _
    // Predicated region
    $region14: #{_encoder_call.1} parent=1 // pred_check
      _
    $region15: #{_encoder_call.1} parent=1 // pred_check_branch
      %34 = sbr.rel (0) target = $region17
    $region16: #{_encoder_call.1} parent=1 // pred_region
      _
    $region17: #{_encoder_call.1} parent=1 // pred_fallthru
      _
    // Predicated region
    $region18: #{_encoder_call.1} parent=1 // pred_check
      _
    $region19: #{_encoder_call.1} parent=1 // pred_check_branch
      %36 = sbr.rel (0) target = $region21
    $region20: #{_encoder_call.1} parent=1 // pred_region
      _
    $region21: #{_encoder_call.1} parent=1 // pred_fallthru
      _
    // Predicated region
    $region22: #{_encoder_call.1} parent=1 // pred_check
      _
    $region23: #{_encoder_call.1} parent=1 // pred_check_branch
      %38 = sbr.rel (0) target = $region25
    $region24: #{_encoder_call.1} parent=1 // pred_region
      %40 = vsyncadd [#allocation6], 0
      %s41 = sshll.u32 %s5, 4
      %s42 = int_to_ptr.hbm [resolvable:$true] %s41
      %s43 = sshll.u32 [#allocation5], 4
      %s44 = int_to_ptr.vmem [resolvable:$true] %s43
      %49 = dma.hbm_to_vmem [thread:$0]  %s42, 256, %s44, [#allocation6], 128, 128, 8
    $region25: #{_encoder_call.1} parent=1 // pred_fallthru
      _
    // Predicated region
    $region26: #{_encoder_call.1} parent=1 // pred_check
      _
    $region27: #{_encoder_call.1} parent=1 // pred_check_branch
      %51 = sbr.rel (0) target = $region29
    $region28: #{_encoder_call.1} parent=1 // pred_region
      %53 = dma.done [#allocation3], 256
    $region29: #{_encoder_call.1} parent=1 // pred_fallthru
      _
    // Predicated region
    $region30: #{_encoder_call.1} parent=1 // pred_check
      _
    $region31: #{_encoder_call.1} parent=1 // pred_check_branch
      %55 = sbr.rel (0) target = $region33
    $region32: #{_encoder_call.1} parent=1 // pred_region
      %57 = dma.done [#allocation6], 256
    $region33: #{_encoder_call.1} parent=1 // pred_fallthru
      _
    %v58 = vld [vmem:[#allocation2] sm:$0xff]
    %v59 = vld [vmem:[#allocation2 + $0x8] sm:$0xff]
    %v60 = vld [vmem:[%s1] sm:$0xff]
    %v61 = vld [vmem:[%s1 + $0x8] sm:$0xff]
    %v62 = vld [vmem:[%s1 + $0x10] sm:$0xff]
    %v63 = vld [vmem:[%s1 + $0x18] sm:$0xff]
    %v64 = vld [vmem:[#allocation5] sm:$0xff]
    %v65 = vperm.slane %v64, 0
    %vm66 = vcmask 261120
    %v68 = vsel %vm66, %v58, 0
    %v71 = vsel %vm66, %v59, 0
    %73 = vmatpush.msra.mxu0 0.0
    %74 = vmatpush.msra.mxu0 0.0
    %75 = vmatpush.msra.mxu0 0.0
    %76 = vmatpush.msra.mxu0 0.0
    %77 = vmatpush.msra.mxu0 0.0
    %78 = vmatpush.msra.mxu0 0.0
    %79 = vmatpush.msra.mxu0 0.0
    %80 = vmatpush.msra.mxu0 0.0
    %81 = vmatpush.msra.mxu0 0.0
    %82 = vmatpush.msra.mxu0 0.0
    %83 = vmatpush.msra.mxu0 0.0
    %84 = vmatpush.msra.mxu0 0.0
    %85 = vmatpush.msra.mxu0 %v63
    %86 = vmatpush.msra.mxu0 %v62
    %87 = vmatpush.msra.mxu0 %v61
    %88 = vmatpush.msra.mxu0 %v60
    %89 = vmatmul.f32.gmra.mxu0 %v68
    %v90 = vpop.f32.mrf.mxu0
    %v91 = vadd.f32 %v65, %v90
    %92 = vmatmul.f32.gmra.mxu0 %v71
    %v93 = vpop.f32.mrf.mxu0
    %v94 = vadd.f32 %v65, %v93
    %95 = vdwg.mxu0
    %v96 = vmul.f32 %v91, 0.35355338
    %v97 = vmul.f32 %v94, 0.35355338
    %99 = vrot.lane.b32.xlu0 %v91, 96
    %v100 = vpop.permute.xlu0 %99
    %vm101 = vcmask 64512
    %v103 = vsel %vm101, %v96, 0
    %v105 = vsel %vm101, %v100, 0
    %107 = vmatpush.xpose.msra.mxu0 0.0
    %108 = vmatpush.xpose.msra.mxu0 0.0
    %109 = vmatpush.xpose.msra.mxu0 0.0
    %110 = vmatpush.xpose.msra.mxu0 0.0
    %111 = vmatpush.xpose.msra.mxu0 0.0
    %112 = vmatpush.xpose.msra.mxu0 0.0
    %113 = vmatpush.xpose.msra.mxu0 0.0
    %114 = vmatpush.xpose.msra.mxu0 0.0
    %115 = vmatpush.xpose.msra.mxu0 0.0
    %116 = vmatpush.xpose.msra.mxu0 0.0
    %117 = vmatpush.xpose.msra.mxu0 0.0
    %118 = vmatpush.xpose.msra.mxu0 0.0
    %119 = vmatpush.xpose.msra.mxu0 0.0
    %120 = vmatpush.xpose.msra.mxu0 0.0
    %121 = vmatpush.xpose.msra.mxu0 0.0
    %122 = vmatpush.xpose.msra.mxu0 %v105
    %123 = vmatmul.f32.gmra.mxu0 %v103
    %v124 = vpop.f32.mrf.mxu0
    %v125 = vadd.f32 0.0, %v124
    %126 = vdwg.mxu0
    %128 = vrot.lane.b32.xlu0 %v94, 96
    %v129 = vpop.permute.xlu0 %128
    %v131 = vsel %vm101, %v97, 0
    %v133 = vsel %vm101, %v129, 0
    %135 = vmatpush.xpose.msra.mxu0 0.0
    %136 = vmatpush.xpose.msra.mxu0 0.0
    %137 = vmatpush.xpose.msra.mxu0 0.0
    %138 = vmatpush.xpose.msra.mxu0 0.0
    %139 = vmatpush.xpose.msra.mxu0 0.0
    %140 = vmatpush.xpose.msra.mxu0 0.0
    %141 = vmatpush.xpose.msra.mxu0 0.0
    %142 = vmatpush.xpose.msra.mxu0 0.0
    %143 = vmatpush.xpose.msra.mxu0 0.0
    %144 = vmatpush.xpose.msra.mxu0 0.0
    %145 = vmatpush.xpose.msra.mxu0 0.0
    %146 = vmatpush.xpose.msra.mxu0 0.0
    %147 = vmatpush.xpose.msra.mxu0 0.0
    %148 = vmatpush.xpose.msra.mxu0 0.0
    %149 = vmatpush.xpose.msra.mxu0 0.0
    %150 = vmatpush.xpose.msra.mxu0 %v133
    %151 = vmatmul.f32.gmra.mxu0 %v131
    %v152 = vpop.f32.mrf.mxu0
    %v153 = vadd.f32 0.0, %v152
    %154 = vdwg.mxu0
    %v155 = vsel %vm101, %v125, -inf
    %156 = vmax.xlane.f32.xlu0 %v155
    %v157 = vpop.xlane.xlu0 %156
    %v158 = vsel %vm101, %v153, -inf
    %159 = vmax.xlane.f32.xlu0 %v158
    %v160 = vpop.xlane.xlu0 %159
    %v161 = vsub.f32 %v125, %v157
    %v162 = vsub.f32 %v153, %v160
    %v163 = vmul.f32 %v161, 1.442695
    %v164 = vpow.pop %v163
    %v165 = vmul.f32 %v162, 1.442695
    %v166 = vpow.pop %v165
    %v167 = vsel %vm101, %v164, 0.0
    %168 = vadd.xlane.f32.xlu0 %v167
    %v169 = vpop.xlane.xlu0 %168
    %v170 = vsel %vm101, %v166, 0.0
    %171 = vadd.xlane.f32.xlu0 %v170
    %v172 = vpop.xlane.xlu0 %171
    %v173 = vrcp.pop %v169
    %v174 = vmul.f32 %v169, %v173
    %v175 = vsub.f32 1.0, %v174
    %v176 = vmul.f32 %v173, %v175
    %v177 = vadd.f32 %v173, %v176
    %vm178 = vweird.f32 %v169
    %vm179 = vweird.f32 %v173
    %vm180 = vmor %vm178, %vm179
    %v181 = vsel %vm180, %v173, %v177
    %v182 = vand.u32 2147483647, %v169
    %vm183 = vcmp.eq.f32.partialorder %v182, 8.507059e+37
    %v184 = vand.u32 %v169, 2147483648
    %v185 = vor.u32 1.1754944e-38, %v184
    %v186 = vsel %vm183, %v185, %v181
    %v187 = vmul.f32 1.0, %v186
    %v188 = vrcp.pop %v172
    %v189 = vmul.f32 %v172, %v188
    %v190 = vsub.f32 1.0, %v189
    %v191 = vmul.f32 %v188, %v190
    %v192 = vadd.f32 %v188, %v191
    %vm193 = vweird.f32 %v172
    %vm194 = vweird.f32 %v188
    %vm195 = vmor %vm193, %vm194
    %v196 = vsel %vm195, %v188, %v192
    %v197 = vand.u32 2147483647, %v172
    %vm198 = vcmp.eq.f32.partialorder %v197, 8.507059e+37
    %v199 = vand.u32 %v172, 2147483648
    %v200 = vor.u32 1.1754944e-38, %v199
    %v201 = vsel %vm198, %v200, %v196
    %v202 = vmul.f32 1.0, %v201
    %v203 = vmul.f32 %v164, %v187
    %v204 = vmul.f32 %v166, %v202
    %205 = vrot.lane.b32.xlu0 %v91, 64
    %v206 = vpop.permute.xlu0 %205
    %v209 = vsel %vm101, %v203, 0
    %211 = vmatpush.msra.mxu0 0.0
    %212 = vmatpush.msra.mxu0 0.0
    %213 = vmatpush.msra.mxu0 0.0
    %214 = vmatpush.msra.mxu0 0.0
    %215 = vmatpush.msra.mxu0 0.0
    %216 = vmatpush.msra.mxu0 0.0
    %217 = vmatpush.msra.mxu0 0.0
    %218 = vmatpush.msra.mxu0 0.0
    %219 = vmatpush.msra.mxu0 0.0
    %220 = vmatpush.msra.mxu0 0.0
    %221 = vmatpush.msra.mxu0 0.0
    %222 = vmatpush.msra.mxu0 0.0
    %223 = vmatpush.msra.mxu0 0.0
    %224 = vmatpush.msra.mxu0 0.0
    %225 = vmatpush.msra.mxu0 0.0
    %226 = vmatpush.msra.mxu0 %v206
    %227 = vmatmul.f32.gmra.mxu0 %v209
    %v228 = vpop.f32.mrf.mxu0
    %v229 = vadd.f32 0.0, %v228
    %230 = vdwg.mxu0
    %231 = vrot.lane.b32.xlu0 %v94, 64
    %v232 = vpop.permute.xlu0 %231
    %v235 = vsel %vm101, %v204, 0
    %237 = vmatpush.msra.mxu0 0.0
    %238 = vmatpush.msra.mxu0 0.0
    %239 = vmatpush.msra.mxu0 0.0
    %240 = vmatpush.msra.mxu0 0.0
    %241 = vmatpush.msra.mxu0 0.0
    %242 = vmatpush.msra.mxu0 0.0
    %243 = vmatpush.msra.mxu0 0.0
    %244 = vmatpush.msra.mxu0 0.0
    %245 = vmatpush.msra.mxu0 0.0
    %246 = vmatpush.msra.mxu0 0.0
    %247 = vmatpush.msra.mxu0 0.0
    %248 = vmatpush.msra.mxu0 0.0
    %249 = vmatpush.msra.mxu0 0.0
    %250 = vmatpush.msra.mxu0 0.0
    %251 = vmatpush.msra.mxu0 0.0
    %252 = vmatpush.msra.mxu0 %v232
    %253 = vmatmul.f32.gmra.mxu0 %v235
    %v254 = vpop.f32.mrf.mxu0
    %v255 = vadd.f32 0.0, %v254
    %256 = vdwg.mxu0
    %257 = vrot.lane.b32.xlu0 %v96, 120
    %v258 = vpop.permute.xlu0 %257
    %259 = vrot.lane.b32.xlu0 %v91, 88
    %v260 = vpop.permute.xlu0 %259
    %v261 = vsel %vm101, %v258, 0
    %v263 = vsel %vm101, %v260, 0
    %265 = vmatpush.xpose.msra.mxu0 0.0
    %266 = vmatpush.xpose.msra.mxu0 0.0
    %267 = vmatpush.xpose.msra.mxu0 0.0
    %268 = vmatpush.xpose.msra.mxu0 0.0
    %269 = vmatpush.xpose.msra.mxu0 0.0
    %270 = vmatpush.xpose.msra.mxu0 0.0
    %271 = vmatpush.xpose.msra.mxu0 0.0
    %272 = vmatpush.xpose.msra.mxu0 0.0
    %273 = vmatpush.xpose.msra.mxu0 0.0
    %274 = vmatpush.xpose.msra.mxu0 0.0
    %275 = vmatpush.xpose.msra.mxu0 0.0
    %276 = vmatpush.xpose.msra.mxu0 0.0
    %277 = vmatpush.xpose.msra.mxu0 0.0
    %278 = vmatpush.xpose.msra.mxu0 0.0
    %279 = vmatpush.xpose.msra.mxu0 0.0
    %280 = vmatpush.xpose.msra.mxu0 %v263
    %281 = vmatmul.f32.gmra.mxu0 %v261
    %v282 = vpop.f32.mrf.mxu0
    %v283 = vadd.f32 0.0, %v282
    %284 = vdwg.mxu0
    %285 = vrot.lane.b32.xlu0 %v97, 120
    %v286 = vpop.permute.xlu0 %285
    %287 = vrot.lane.b32.xlu0 %v94, 88
    %v288 = vpop.permute.xlu0 %287
    %v289 = vsel %vm101, %v286, 0
    %v291 = vsel %vm101, %v288, 0
    %293 = vmatpush.xpose.msra.mxu0 0.0
    %294 = vmatpush.xpose.msra.mxu0 0.0
    %295 = vmatpush.xpose.msra.mxu0 0.0
    %296 = vmatpush.xpose.msra.mxu0 0.0
    %297 = vmatpush.xpose.msra.mxu0 0.0
    %298 = vmatpush.xpose.msra.mxu0 0.0
    %299 = vmatpush.xpose.msra.mxu0 0.0
    %300 = vmatpush.xpose.msra.mxu0 0.0
    %301 = vmatpush.xpose.msra.mxu0 0.0
    %302 = vmatpush.xpose.msra.mxu0 0.0
    %303 = vmatpush.xpose.msra.mxu0 0.0
    %304 = vmatpush.xpose.msra.mxu0 0.0
    %305 = vmatpush.xpose.msra.mxu0 0.0
    %306 = vmatpush.xpose.msra.mxu0 0.0
    %307 = vmatpush.xpose.msra.mxu0 0.0
    %308 = vmatpush.xpose.msra.mxu0 %v291
    %309 = vmatmul.f32.gmra.mxu0 %v289
    %v310 = vpop.f32.mrf.mxu0
    %v311 = vadd.f32 0.0, %v310
    %312 = vdwg.mxu0
    %v313 = vsel %vm101, %v283, -inf
    %314 = vmax.xlane.f32.xlu0 %v313
    %v315 = vpop.xlane.xlu0 %314
    %v316 = vsel %vm101, %v311, -inf
    %317 = vmax.xlane.f32.xlu0 %v316
    %v318 = vpop.xlane.xlu0 %317
    %v319 = vsub.f32 %v283, %v315
    %v320 = vsub.f32 %v311, %v318
    %v321 = vmul.f32 %v319, 1.442695
    %v322 = vpow.pop %v321
    %v323 = vmul.f32 %v320, 1.442695
    %v324 = vpow.pop %v323
    %v325 = vsel %vm101, %v322, 0.0
    %326 = vadd.xlane.f32.xlu0 %v325
    %v327 = vpop.xlane.xlu0 %326
    %v328 = vsel %vm101, %v324, 0.0
    %329 = vadd.xlane.f32.xlu0 %v328
    %v330 = vpop.xlane.xlu0 %329
    %v331 = vrcp.pop %v327
    %v332 = vmul.f32 %v327, %v331
    %v333 = vsub.f32 1.0, %v332
    %v334 = vmul.f32 %v331, %v333
    %v335 = vadd.f32 %v331, %v334
    %vm336 = vweird.f32 %v327
    %vm337 = vweird.f32 %v331
    %vm338 = vmor %vm336, %vm337
    %v339 = vsel %vm338, %v331, %v335
    %v340 = vand.u32 2147483647, %v327
    %vm341 = vcmp.eq.f32.partialorder %v340, 8.507059e+37
    %v342 = vand.u32 %v327, 2147483648
    %v343 = vor.u32 1.1754944e-38, %v342
    %v344 = vsel %vm341, %v343, %v339
    %v345 = vmul.f32 1.0, %v344
    %v346 = vrcp.pop %v330
    %v347 = vmul.f32 %v330, %v346
    %v348 = vsub.f32 1.0, %v347
    %v349 = vmul.f32 %v346, %v348
    %v350 = vadd.f32 %v346, %v349
    %vm351 = vweird.f32 %v330
    %vm352 = vweird.f32 %v346
    %vm353 = vmor %vm351, %vm352
    %v354 = vsel %vm353, %v346, %v350
    %v355 = vand.u32 2147483647, %v330
    %vm356 = vcmp.eq.f32.partialorder %v355, 8.507059e+37
    %v357 = vand.u32 %v330, 2147483648
    %v358 = vor.u32 1.1754944e-38, %v357
    %v359 = vsel %vm356, %v358, %v354
    %v360 = vmul.f32 1.0, %v359
    %v361 = vmul.f32 %v322, %v345
    %v362 = vmul.f32 %v324, %v360
    %363 = vrot.lane.b32.xlu0 %v91, 56
    %v364 = vpop.permute.xlu0 %363
    %v367 = vsel %vm101, %v361, 0
    %369 = vmatpush.msra.mxu0 0.0
    %370 = vmatpush.msra.mxu0 0.0
    %371 = vmatpush.msra.mxu0 0.0
    %372 = vmatpush.msra.mxu0 0.0
    %373 = vmatpush.msra.mxu0 0.0
    %374 = vmatpush.msra.mxu0 0.0
    %375 = vmatpush.msra.mxu0 0.0
    %376 = vmatpush.msra.mxu0 0.0
    %377 = vmatpush.msra.mxu0 0.0
    %378 = vmatpush.msra.mxu0 0.0
    %379 = vmatpush.msra.mxu0 0.0
    %380 = vmatpush.msra.mxu0 0.0
    %381 = vmatpush.msra.mxu0 0.0
    %382 = vmatpush.msra.mxu0 0.0
    %383 = vmatpush.msra.mxu0 0.0
    %384 = vmatpush.msra.mxu0 %v364
    %385 = vmatmul.f32.gmra.mxu0 %v367
    %v386 = vpop.f32.mrf.mxu0
    %v387 = vadd.f32 0.0, %v386
    %388 = vdwg.mxu0
    %389 = vrot.lane.b32.xlu0 %v94, 56
    %v390 = vpop.permute.xlu0 %389
    %v393 = vsel %vm101, %v362, 0
    %395 = vmatpush.msra.mxu0 0.0
    %396 = vmatpush.msra.mxu0 0.0
    %397 = vmatpush.msra.mxu0 0.0
    %398 = vmatpush.msra.mxu0 0.0
    %399 = vmatpush.msra.mxu0 0.0
    %400 = vmatpush.msra.mxu0 0.0
    %401 = vmatpush.msra.mxu0 0.0
    %402 = vmatpush.msra.mxu0 0.0
    %403 = vmatpush.msra.mxu0 0.0
    %404 = vmatpush.msra.mxu0 0.0
    %405 = vmatpush.msra.mxu0 0.0
    %406 = vmatpush.msra.mxu0 0.0
    %407 = vmatpush.msra.mxu0 0.0
    %408 = vmatpush.msra.mxu0 0.0
    %409 = vmatpush.msra.mxu0 0.0
    %410 = vmatpush.msra.mxu0 %v390
    %411 = vmatmul.f32.gmra.mxu0 %v393
    %v412 = vpop.f32.mrf.mxu0
    %v413 = vadd.f32 0.0, %v412
    %414 = vdwg.mxu0
    %415 = vrot.lane.b32.xlu0 %v96, 112
    %v416 = vpop.permute.xlu0 %415
    %417 = vrot.lane.b32.xlu0 %v91, 80
    %v418 = vpop.permute.xlu0 %417
    %v419 = vsel %vm101, %v416, 0
    %v421 = vsel %vm101, %v418, 0
    %423 = vmatpush.xpose.msra.mxu0 0.0
    %424 = vmatpush.xpose.msra.mxu0 0.0
    %425 = vmatpush.xpose.msra.mxu0 0.0
    %426 = vmatpush.xpose.msra.mxu0 0.0
    %427 = vmatpush.xpose.msra.mxu0 0.0
    %428 = vmatpush.xpose.msra.mxu0 0.0
    %429 = vmatpush.xpose.msra.mxu0 0.0
    %430 = vmatpush.xpose.msra.mxu0 0.0
    %431 = vmatpush.xpose.msra.mxu0 0.0
    %432 = vmatpush.xpose.msra.mxu0 0.0
    %433 = vmatpush.xpose.msra.mxu0 0.0
    %434 = vmatpush.xpose.msra.mxu0 0.0
    %435 = vmatpush.xpose.msra.mxu0 0.0
    %436 = vmatpush.xpose.msra.mxu0 0.0
    %437 = vmatpush.xpose.msra.mxu0 0.0
    %438 = vmatpush.xpose.msra.mxu0 %v421
    %439 = vmatmul.f32.gmra.mxu0 %v419
    %v440 = vpop.f32.mrf.mxu0
    %v441 = vadd.f32 0.0, %v440
    %442 = vdwg.mxu0
    %443 = vrot.lane.b32.xlu0 %v97, 112
    %v444 = vpop.permute.xlu0 %443
    %445 = vrot.lane.b32.xlu0 %v94, 80
    %v446 = vpop.permute.xlu0 %445
    %v447 = vsel %vm101, %v444, 0
    %v449 = vsel %vm101, %v446, 0
    %451 = vmatpush.xpose.msra.mxu0 0.0
    %452 = vmatpush.xpose.msra.mxu0 0.0
    %453 = vmatpush.xpose.msra.mxu0 0.0
    %454 = vmatpush.xpose.msra.mxu0 0.0
    %455 = vmatpush.xpose.msra.mxu0 0.0
    %456 = vmatpush.xpose.msra.mxu0 0.0
    %457 = vmatpush.xpose.msra.mxu0 0.0
    %458 = vmatpush.xpose.msra.mxu0 0.0
    %459 = vmatpush.xpose.msra.mxu0 0.0
    %460 = vmatpush.xpose.msra.mxu0 0.0
    %461 = vmatpush.xpose.msra.mxu0 0.0
    %462 = vmatpush.xpose.msra.mxu0 0.0
    %463 = vmatpush.xpose.msra.mxu0 0.0
    %464 = vmatpush.xpose.msra.mxu0 0.0
    %465 = vmatpush.xpose.msra.mxu0 0.0
    %466 = vmatpush.xpose.msra.mxu0 %v449
    %467 = vmatmul.f32.gmra.mxu0 %v447
    %v468 = vpop.f32.mrf.mxu0
    %v469 = vadd.f32 0.0, %v468
    %470 = vdwg.mxu0
    %v471 = vsel %vm101, %v441, -inf
    %472 = vmax.xlane.f32.xlu0 %v471
    %v473 = vpop.xlane.xlu0 %472
    %v474 = vsel %vm101, %v469, -inf
    %475 = vmax.xlane.f32.xlu0 %v474
    %v476 = vpop.xlane.xlu0 %475
    %v477 = vsub.f32 %v441, %v473
    %v478 = vsub.f32 %v469, %v476
    %v479 = vmul.f32 %v477, 1.442695
    %v480 = vpow.pop %v479
    %v481 = vmul.f32 %v478, 1.442695
    %v482 = vpow.pop %v481
    %v483 = vsel %vm101, %v480, 0.0
    %484 = vadd.xlane.f32.xlu0 %v483
    %v485 = vpop.xlane.xlu0 %484
    %v486 = vsel %vm101, %v482, 0.0
    %487 = vadd.xlane.f32.xlu0 %v486
    %v488 = vpop.xlane.xlu0 %487
    %v489 = vrcp.pop %v485
    %v490 = vmul.f32 %v485, %v489
    %v491 = vsub.f32 1.0, %v490
    %v492 = vmul.f32 %v489, %v491
    %v493 = vadd.f32 %v489, %v492
    %vm494 = vweird.f32 %v485
    %vm495 = vweird.f32 %v489
    %vm496 = vmor %vm494, %vm495
    %v497 = vsel %vm496, %v489, %v493
    %v498 = vand.u32 2147483647, %v485
    %vm499 = vcmp.eq.f32.partialorder %v498, 8.507059e+37
    %v500 = vand.u32 %v485, 2147483648
    %v501 = vor.u32 1.1754944e-38, %v500
    %v502 = vsel %vm499, %v501, %v497
    %v503 = vmul.f32 1.0, %v502
    %v504 = vrcp.pop %v488
    %v505 = vmul.f32 %v488, %v504
    %v506 = vsub.f32 1.0, %v505
    %v507 = vmul.f32 %v504, %v506
    %v508 = vadd.f32 %v504, %v507
    %vm509 = vweird.f32 %v488
    %vm510 = vweird.f32 %v504
    %vm511 = vmor %vm509, %vm510
    %v512 = vsel %vm511, %v504, %v508
    %v513 = vand.u32 2147483647, %v488
    %vm514 = vcmp.eq.f32.partialorder %v513, 8.507059e+37
    %v515 = vand.u32 %v488, 2147483648
    %v516 = vor.u32 1.1754944e-38, %v515
    %v517 = vsel %vm514, %v516, %v512
    %v518 = vmul.f32 1.0, %v517
    %v519 = vmul.f32 %v480, %v503
    %v520 = vmul.f32 %v482, %v518
    %521 = vrot.lane.b32.xlu0 %v91, 48
    %v522 = vpop.permute.xlu0 %521
    %v525 = vsel %vm101, %v519, 0
    %527 = vmatpush.msra.mxu0 0.0
    %528 = vmatpush.msra.mxu0 0.0
    %529 = vmatpush.msra.mxu0 0.0
    %530 = vmatpush.msra.mxu0 0.0
    %531 = vmatpush.msra.mxu0 0.0
    %532 = vmatpush.msra.mxu0 0.0
    %533 = vmatpush.msra.mxu0 0.0
    %534 = vmatpush.msra.mxu0 0.0
    %535 = vmatpush.msra.mxu0 0.0
    %536 = vmatpush.msra.mxu0 0.0
    %537 = vmatpush.msra.mxu0 0.0
    %538 = vmatpush.msra.mxu0 0.0
    %539 = vmatpush.msra.mxu0 0.0
    %540 = vmatpush.msra.mxu0 0.0
    %541 = vmatpush.msra.mxu0 0.0
    %542 = vmatpush.msra.mxu0 %v522
    %543 = vmatmul.f32.gmra.mxu0 %v525
    %v544 = vpop.f32.mrf.mxu0
    %v545 = vadd.f32 0.0, %v544
    %546 = vdwg.mxu0
    %547 = vrot.lane.b32.xlu0 %v94, 48
    %v548 = vpop.permute.xlu0 %547
    %v551 = vsel %vm101, %v520, 0
    %553 = vmatpush.msra.mxu0 0.0
    %554 = vmatpush.msra.mxu0 0.0
    %555 = vmatpush.msra.mxu0 0.0
    %556 = vmatpush.msra.mxu0 0.0
    %557 = vmatpush.msra.mxu0 0.0
    %558 = vmatpush.msra.mxu0 0.0
    %559 = vmatpush.msra.mxu0 0.0
    %560 = vmatpush.msra.mxu0 0.0
    %561 = vmatpush.msra.mxu0 0.0
    %562 = vmatpush.msra.mxu0 0.0
    %563 = vmatpush.msra.mxu0 0.0
    %564 = vmatpush.msra.mxu0 0.0
    %565 = vmatpush.msra.mxu0 0.0
    %566 = vmatpush.msra.mxu0 0.0
    %567 = vmatpush.msra.mxu0 0.0
    %568 = vmatpush.msra.mxu0 %v548
    %569 = vmatmul.f32.gmra.mxu0 %v551
    %v570 = vpop.f32.mrf.mxu0
    %v571 = vadd.f32 0.0, %v570
    %572 = vdwg.mxu0
    %573 = vrot.lane.b32.xlu0 %v96, 104
    %v574 = vpop.permute.xlu0 %573
    %575 = vrot.lane.b32.xlu0 %v91, 72
    %v576 = vpop.permute.xlu0 %575
    %v577 = vsel %vm101, %v574, 0
    %v579 = vsel %vm101, %v576, 0
    %581 = vmatpush.xpose.msra.mxu0 0.0
    %582 = vmatpush.xpose.msra.mxu0 0.0
    %583 = vmatpush.xpose.msra.mxu0 0.0
    %584 = vmatpush.xpose.msra.mxu0 0.0
    %585 = vmatpush.xpose.msra.mxu0 0.0
    %586 = vmatpush.xpose.msra.mxu0 0.0
    %587 = vmatpush.xpose.msra.mxu0 0.0
    %588 = vmatpush.xpose.msra.mxu0 0.0
    %589 = vmatpush.xpose.msra.mxu0 0.0
    %590 = vmatpush.xpose.msra.mxu0 0.0
    %591 = vmatpush.xpose.msra.mxu0 0.0
    %592 = vmatpush.xpose.msra.mxu0 0.0
    %593 = vmatpush.xpose.msra.mxu0 0.0
    %594 = vmatpush.xpose.msra.mxu0 0.0
    %595 = vmatpush.xpose.msra.mxu0 0.0
    %596 = vmatpush.xpose.msra.mxu0 %v579
    %597 = vmatmul.f32.gmra.mxu0 %v577
    %v598 = vpop.f32.mrf.mxu0
    %v599 = vadd.f32 0.0, %v598
    %600 = vdwg.mxu0
    %601 = vrot.lane.b32.xlu0 %v97, 104
    %v602 = vpop.permute.xlu0 %601
    %603 = vrot.lane.b32.xlu0 %v94, 72
    %v604 = vpop.permute.xlu0 %603
    %v605 = vsel %vm101, %v602, 0
    %v607 = vsel %vm101, %v604, 0
    %609 = vmatpush.xpose.msra.mxu0 0.0
    %610 = vmatpush.xpose.msra.mxu0 0.0
    %611 = vmatpush.xpose.msra.mxu0 0.0
    %612 = vmatpush.xpose.msra.mxu0 0.0
    %613 = vmatpush.xpose.msra.mxu0 0.0
    %614 = vmatpush.xpose.msra.mxu0 0.0
    %615 = vmatpush.xpose.msra.mxu0 0.0
    %616 = vmatpush.xpose.msra.mxu0 0.0
    %617 = vmatpush.xpose.msra.mxu0 0.0
    %618 = vmatpush.xpose.msra.mxu0 0.0
    %619 = vmatpush.xpose.msra.mxu0 0.0
    %620 = vmatpush.xpose.msra.mxu0 0.0
    %621 = vmatpush.xpose.msra.mxu0 0.0
    %622 = vmatpush.xpose.msra.mxu0 0.0
    %623 = vmatpush.xpose.msra.mxu0 0.0
    %624 = vmatpush.xpose.msra.mxu0 %v607
    %625 = vmatmul.f32.gmra.mxu0 %v605
    %v626 = vpop.f32.mrf.mxu0
    %v627 = vadd.f32 0.0, %v626
    %628 = vdwg.mxu0
    %v629 = vsel %vm101, %v599, -inf
    %630 = vmax.xlane.f32.xlu0 %v629
    %v631 = vpop.xlane.xlu0 %630
    %v632 = vsel %vm101, %v627, -inf
    %633 = vmax.xlane.f32.xlu0 %v632
    %v634 = vpop.xlane.xlu0 %633
    %v635 = vsub.f32 %v599, %v631
    %v636 = vsub.f32 %v627, %v634
    %v637 = vmul.f32 %v635, 1.442695
    %v638 = vpow.pop %v637
    %v639 = vmul.f32 %v636, 1.442695
    %v640 = vpow.pop %v639
    %v641 = vsel %vm101, %v638, 0.0
    %642 = vadd.xlane.f32.xlu0 %v641
    %v643 = vpop.xlane.xlu0 %642
    %v644 = vsel %vm101, %v640, 0.0
    %645 = vadd.xlane.f32.xlu0 %v644
    %v646 = vpop.xlane.xlu0 %645
    %v647 = vrcp.pop %v643
    %v648 = vmul.f32 %v643, %v647
    %v649 = vsub.f32 1.0, %v648
    %v650 = vmul.f32 %v647, %v649
    %v651 = vadd.f32 %v647, %v650
    %vm652 = vweird.f32 %v643
    %vm653 = vweird.f32 %v647
    %vm654 = vmor %vm652, %vm653
    %v655 = vsel %vm654, %v647, %v651
    %v656 = vand.u32 2147483647, %v643
    %vm657 = vcmp.eq.f32.partialorder %v656, 8.507059e+37
    %v658 = vand.u32 %v643, 2147483648
    %v659 = vor.u32 1.1754944e-38, %v658
    %v660 = vsel %vm657, %v659, %v655
    %v661 = vmul.f32 1.0, %v660
    %v662 = vrcp.pop %v646
    %v663 = vmul.f32 %v646, %v662
    %v664 = vsub.f32 1.0, %v663
    %v665 = vmul.f32 %v662, %v664
    %v666 = vadd.f32 %v662, %v665
    %vm667 = vweird.f32 %v646
    %vm668 = vweird.f32 %v662
    %vm669 = vmor %vm667, %vm668
    %v670 = vsel %vm669, %v662, %v666
    %v671 = vand.u32 2147483647, %v646
    %vm672 = vcmp.eq.f32.partialorder %v671, 8.507059e+37
    %v673 = vand.u32 %v646, 2147483648
    %v674 = vor.u32 1.1754944e-38, %v673
    %v675 = vsel %vm672, %v674, %v670
    %v676 = vmul.f32 1.0, %v675
    %v677 = vmul.f32 %v638, %v661
    %v678 = vmul.f32 %v640, %v676
    %679 = vrot.lane.b32.xlu0 %v91, 40
    %v680 = vpop.permute.xlu0 %679
    %v683 = vsel %vm101, %v677, 0
    %685 = vmatpush.msra.mxu0 0.0
    %686 = vmatpush.msra.mxu0 0.0
    %687 = vmatpush.msra.mxu0 0.0
    %688 = vmatpush.msra.mxu0 0.0
    %689 = vmatpush.msra.mxu0 0.0
    %690 = vmatpush.msra.mxu0 0.0
    %691 = vmatpush.msra.mxu0 0.0
    %692 = vmatpush.msra.mxu0 0.0
    %693 = vmatpush.msra.mxu0 0.0
    %694 = vmatpush.msra.mxu0 0.0
    %695 = vmatpush.msra.mxu0 0.0
    %696 = vmatpush.msra.mxu0 0.0
    %697 = vmatpush.msra.mxu0 0.0
    %698 = vmatpush.msra.mxu0 0.0
    %699 = vmatpush.msra.mxu0 0.0
    %700 = vmatpush.msra.mxu0 %v680
    %701 = vmatmul.f32.gmra.mxu0 %v683
    %v702 = vpop.f32.mrf.mxu0
    %v703 = vadd.f32 0.0, %v702
    %704 = vdwg.mxu0
    %705 = vrot.lane.b32.xlu0 %v94, 40
    %v706 = vpop.permute.xlu0 %705
    %v709 = vsel %vm101, %v678, 0
    %711 = vmatpush.msra.mxu0 0.0
    %712 = vmatpush.msra.mxu0 0.0
    %713 = vmatpush.msra.mxu0 0.0
    %714 = vmatpush.msra.mxu0 0.0
    %715 = vmatpush.msra.mxu0 0.0
    %716 = vmatpush.msra.mxu0 0.0
    %717 = vmatpush.msra.mxu0 0.0
    %718 = vmatpush.msra.mxu0 0.0
    %719 = vmatpush.msra.mxu0 0.0
    %720 = vmatpush.msra.mxu0 0.0
    %721 = vmatpush.msra.mxu0 0.0
    %722 = vmatpush.msra.mxu0 0.0
    %723 = vmatpush.msra.mxu0 0.0
    %724 = vmatpush.msra.mxu0 0.0
    %725 = vmatpush.msra.mxu0 0.0
    %726 = vmatpush.msra.mxu0 %v706
    %727 = vmatmul.f32.gmra.mxu0 %v709
    %v728 = vpop.f32.mrf.mxu0
    %v729 = vadd.f32 0.0, %v728
    %730 = vdwg.mxu0
    %731 = vrot.lane.b32.xlu0 %v361, 8
    %v732 = vpop.permute.xlu0 %731
    %733 = vrot.lane.b32.xlu0 %v362, 8
    %v734 = vpop.permute.xlu0 %733
    %737 = vrot.lane.b32.xlu0 %v519, 16
    %v738 = vpop.permute.xlu0 %737
    %739 = vrot.lane.b32.xlu0 %v520, 16
    %v740 = vpop.permute.xlu0 %739
    %743 = vrot.lane.b32.xlu0 %v677, 24
    %v744 = vpop.permute.xlu0 %743
    %745 = vrot.lane.b32.xlu0 %v678, 24
    %v746 = vpop.permute.xlu0 %745
    %v749 = vsel %vm101, %v203, %v732
    %v750 = vsel %vm101, %v204, %v734
    %vm751 = vcmask 130048
    %v752 = vsel %vm751, %v749, %v738
    %v753 = vsel %vm751, %v750, %v740
    %vm754 = vcmask 195584
    %v755 = vsel %vm754, %v752, %v744
    %v756 = vsel %vm754, %v753, %v746
    %757 = vst.msk [vmem:[%s7] sm:$0xff] %vm66, %v755
    %758 = vst.msk [vmem:[%s7 + $0x8] sm:$0xff] %vm66, %v756
    %761 = vrot.lane.b32.xlu0 %v387, 8
    %v762 = vpop.permute.xlu0 %761
    %763 = vrot.lane.b32.xlu0 %v413, 8
    %v764 = vpop.permute.xlu0 %763
    %769 = vrot.lane.b32.xlu0 %v545, 16
    %v770 = vpop.permute.xlu0 %769
    %771 = vrot.lane.b32.xlu0 %v571, 16
    %v772 = vpop.permute.xlu0 %771
    %777 = vrot.lane.b32.xlu0 %v703, 24
    %v778 = vpop.permute.xlu0 %777
    %779 = vrot.lane.b32.xlu0 %v729, 24
    %v780 = vpop.permute.xlu0 %779
    %v783 = vsel %vm101, %v229, %v762
    %v784 = vsel %vm101, %v255, %v764
    %v785 = vsel %vm751, %v783, %v770
    %v786 = vsel %vm751, %v784, %v772
    %v787 = vsel %vm754, %v785, %v778
    %v788 = vsel %vm754, %v786, %v780
    %v789 = vld [vmem:[%s2] sm:$0xff]
    %v790 = vld [vmem:[%s2 + $0x8] sm:$0xff]
    %v791 = vld [vmem:[%s2 + $0x10] sm:$0xff]
    %v792 = vld [vmem:[%s2 + $0x18] sm:$0xff]
    %v793 = vperm.slane %v64, 1
    %v795 = vsel %vm66, %v787, 0
    %v798 = vsel %vm66, %v788, 0
    %800 = vmatpush.msra.mxu0 0.0
    %801 = vmatpush.msra.mxu0 0.0
    %802 = vmatpush.msra.mxu0 0.0
    %803 = vmatpush.msra.mxu0 0.0
    %804 = vmatpush.msra.mxu0 0.0
    %805 = vmatpush.msra.mxu0 0.0
    %806 = vmatpush.msra.mxu0 0.0
    %807 = vmatpush.msra.mxu0 0.0
    %808 = vmatpush.msra.mxu0 0.0
    %809 = vmatpush.msra.mxu0 0.0
    %810 = vmatpush.msra.mxu0 0.0
    %811 = vmatpush.msra.mxu0 0.0
    %812 = vmatpush.msra.mxu0 %v792
    %813 = vmatpush.msra.mxu0 %v791
    %814 = vmatpush.msra.mxu0 %v790
    %815 = vmatpush.msra.mxu0 %v789
    %816 = vmatmul.f32.gmra.mxu0 %v795
    %v817 = vpop.f32.mrf.mxu0
    %v818 = vadd.f32 %v793, %v817
    %819 = vmatmul.f32.gmra.mxu0 %v798
    %v820 = vpop.f32.mrf.mxu0
    %v821 = vadd.f32 %v793, %v820
    %822 = vdwg.mxu0
    %v823 = vadd.f32 %v58, %v818
    %v824 = vadd.f32 %v59, %v821
    %v825 = vsel %vm66, %v823, 0.0
    %826 = vadd.xlane.f32.xlu0 %v825
    %v827 = vpop.xlane.xlu0 %826
    %v828 = vsel %vm66, %v824, 0.0
    %829 = vadd.xlane.f32.xlu0 %v828
    %v830 = vpop.xlane.xlu0 %829
    %v831 = vrcp.pop 32.0
    %v832 = vmul.f32 32.0, %v831
    %v833 = vsub.f32 1.0, %v832
    %v834 = vmul.f32 %v831, %v833
    %v835 = vadd.f32 %v831, %v834
    %vm836 = vweird.f32 %v831
    %v837 = vsel %vm836, %v831, %v835
    %v838 = vmul.f32 %v827, %v837
    %v839 = vmul.f32 %v830, %v837
    %v840 = vsub.f32 %v823, %v838
    %v841 = vsub.f32 %v824, %v839
    %v842 = vmul.f32 %v840, %v840
    %v843 = vmul.f32 %v841, %v841
    %v844 = vsel %vm66, %v842, 0.0
    %845 = vadd.xlane.f32.xlu0 %v844
    %v846 = vpop.xlane.xlu0 %845
    %v847 = vsel %vm66, %v843, 0.0
    %848 = vadd.xlane.f32.xlu0 %v847
    %v849 = vpop.xlane.xlu0 %848
    %v850 = vmul.f32 %v846, %v837
    %v851 = vmul.f32 %v849, %v837
    %v852 = vadd.f32 %v850, 1e-05
    %v853 = vadd.f32 %v851, 1e-05
    %v854 = vrsqrt.pop %v852
    %v855 = vmul.f32 %v854, %v852
    %v856 = vmul.f32 %v855, %v854
    %v857 = vmul.f32 0.5, %v856
    %v858 = vsub.f32 1.5, %v857
    %v859 = vmul.f32 %v854, %v858
    %vm860 = vweird.f32 %v852
    %vm861 = vweird.f32 %v854
    %vm862 = vmor %vm860, %vm861
    %v863 = vsel %vm862, %v854, %v859
    %v864 = vrsqrt.pop %v853
    %v865 = vmul.f32 %v864, %v853
    %v866 = vmul.f32 %v865, %v864
    %v867 = vmul.f32 0.5, %v866
    %v868 = vsub.f32 1.5, %v867
    %v869 = vmul.f32 %v864, %v868
    %vm870 = vweird.f32 %v853
    %vm871 = vweird.f32 %v864
    %vm872 = vmor %vm870, %vm871
    %v873 = vsel %vm872, %v864, %v869
    %v874 = vmul.f32 %v840, %v863
    %v875 = vmul.f32 %v841, %v873
    %v876 = vperm.slane %v64, 4
    %v877 = vmul.f32 %v874, %v876
    %v878 = vmul.f32 %v875, %v876
    %v879 = vperm.slane %v64, 5
    %v880 = vadd.f32 %v877, %v879
    %v881 = vadd.f32 %v878, %v879
    %v882 = vld [vmem:[%s3] sm:$0xff]
    %v883 = vld [vmem:[%s3 + $0x8] sm:$0xff]
    %v884 = vld [vmem:[%s3 + $0x10] sm:$0xff]
    %v885 = vld [vmem:[%s3 + $0x18] sm:$0xff]
    %v886 = vperm.slane %v64, 2
    %v888 = vsel %vm66, %v880, 0
    %v891 = vsel %vm66, %v881, 0
    %893 = vmatpush.msra.mxu0 0.0
    %894 = vmatpush.msra.mxu0 0.0
    %895 = vmatpush.msra.mxu0 0.0
    %896 = vmatpush.msra.mxu0 0.0
    %897 = vmatpush.msra.mxu0 0.0
    %898 = vmatpush.msra.mxu0 0.0
    %899 = vmatpush.msra.mxu0 0.0
    %900 = vmatpush.msra.mxu0 0.0
    %901 = vmatpush.msra.mxu0 0.0
    %902 = vmatpush.msra.mxu0 0.0
    %903 = vmatpush.msra.mxu0 0.0
    %904 = vmatpush.msra.mxu0 0.0
    %905 = vmatpush.msra.mxu0 %v885
    %906 = vmatpush.msra.mxu0 %v884
    %907 = vmatpush.msra.mxu0 %v883
    %908 = vmatpush.msra.mxu0 %v882
    %909 = vmatmul.f32.gmra.mxu0 %v888
    %v910 = vpop.f32.mrf.mxu0
    %v911 = vadd.f32 %v886, %v910
    %912 = vmatmul.f32.gmra.mxu0 %v891
    %v913 = vpop.f32.mrf.mxu0
    %v914 = vadd.f32 %v886, %v913
    %915 = vdwg.mxu0
    %v916 = vmax.f32 %v911, 0.0
    %v917 = vmax.f32 %v914, 0.0
    %v918 = vld [vmem:[%s4] sm:$0xff]
    %v919 = vld [vmem:[%s4 + $0x8] sm:$0xff]
    %v920 = vld [vmem:[%s4 + $0x10] sm:$0xff]
    %v921 = vld [vmem:[%s4 + $0x18] sm:$0xff]
    %v922 = vld [vmem:[%s4 + $0x20] sm:$0xff]
    %v923 = vld [vmem:[%s4 + $0x28] sm:$0xff]
    %v924 = vld [vmem:[%s4 + $0x30] sm:$0xff]
    %v925 = vld [vmem:[%s4 + $0x38] sm:$0xff]
    %v926 = vperm.slane %v64, 3
    %vm927 = vcmask 523264
    %v929 = vsel %vm927, %v916, 0
    %v932 = vsel %vm927, %v917, 0
    %934 = vmatpush.msra.mxu0 0.0
    %935 = vmatpush.msra.mxu0 0.0
    %936 = vmatpush.msra.mxu0 0.0
    %937 = vmatpush.msra.mxu0 0.0
    %938 = vmatpush.msra.mxu0 0.0
    %939 = vmatpush.msra.mxu0 0.0
    %940 = vmatpush.msra.mxu0 0.0
    %941 = vmatpush.msra.mxu0 0.0
    %942 = vmatpush.msra.mxu0 %v925
    %943 = vmatpush.msra.mxu0 %v924
    %944 = vmatpush.msra.mxu0 %v923
    %945 = vmatpush.msra.mxu0 %v922
    %946 = vmatpush.msra.mxu0 %v921
    %947 = vmatpush.msra.mxu0 %v920
    %948 = vmatpush.msra.mxu0 %v919
    %949 = vmatpush.msra.mxu0 %v918
    %950 = vmatmul.f32.gmra.mxu0 %v929
    %v951 = vpop.f32.mrf.mxu0
    %v952 = vadd.f32 %v926, %v951
    %953 = vmatmul.f32.gmra.mxu0 %v932
    %v954 = vpop.f32.mrf.mxu0
    %v955 = vadd.f32 %v926, %v954
    %956 = vdwg.mxu0
    %v957 = vadd.f32 %v880, %v952
    %v958 = vadd.f32 %v881, %v955
    %v959 = vsel %vm66, %v957, 0.0
    %960 = vadd.xlane.f32.xlu0 %v959
    %v961 = vpop.xlane.xlu0 %960
    %v962 = vsel %vm66, %v958, 0.0
    %963 = vadd.xlane.f32.xlu0 %v962
    %v964 = vpop.xlane.xlu0 %963
    %v965 = vmul.f32 %v961, %v837
    %v966 = vmul.f32 %v964, %v837
    %v967 = vsub.f32 %v957, %v965
    %v968 = vsub.f32 %v958, %v966
    %v969 = vmul.f32 %v967, %v967
    %v970 = vmul.f32 %v968, %v968
    %v971 = vsel %vm66, %v969, 0.0
    %972 = vadd.xlane.f32.xlu0 %v971
    %v973 = vpop.xlane.xlu0 %972
    %v974 = vsel %vm66, %v970, 0.0
    %975 = vadd.xlane.f32.xlu0 %v974
    %v976 = vpop.xlane.xlu0 %975
    %v977 = vmul.f32 %v973, %v837
    %v978 = vmul.f32 %v976, %v837
    %v979 = vadd.f32 %v977, 1e-05
    %v980 = vadd.f32 %v978, 1e-05
    %v981 = vrsqrt.pop %v979
    %v982 = vmul.f32 %v981, %v979
    %v983 = vmul.f32 %v982, %v981
    %v984 = vmul.f32 0.5, %v983
    %v985 = vsub.f32 1.5, %v984
    %v986 = vmul.f32 %v981, %v985
    %vm987 = vweird.f32 %v979
    %vm988 = vweird.f32 %v981
    %vm989 = vmor %vm987, %vm988
    %v990 = vsel %vm989, %v981, %v986
    %v991 = vrsqrt.pop %v980
    %v992 = vmul.f32 %v991, %v980
    %v993 = vmul.f32 %v992, %v991
    %v994 = vmul.f32 0.5, %v993
    %v995 = vsub.f32 1.5, %v994
    %v996 = vmul.f32 %v991, %v995
    %vm997 = vweird.f32 %v980
    %vm998 = vweird.f32 %v991
    %vm999 = vmor %vm997, %vm998
    %v1000 = vsel %vm999, %v991, %v996
    %v1001 = vmul.f32 %v967, %v990
    %v1002 = vmul.f32 %v968, %v1000
    %v1003 = vperm.slane %v64, 6
    %v1004 = vmul.f32 %v1001, %v1003
    %v1005 = vmul.f32 %v1002, %v1003
    %v1006 = vperm.slane %v64, 7
    %v1007 = vadd.f32 %v1004, %v1006
    %v1008 = vadd.f32 %v1005, %v1006
    %s1009 = scalar_lea.vmem %s1, 32
    %v1010 = vld [vmem:[%s1009] sm:$0xff]
    %v1011 = vld [vmem:[%s1009 + $0x8] sm:$0xff]
    %v1012 = vld [vmem:[%s1009 + $0x10] sm:$0xff]
    %v1013 = vld [vmem:[%s1009 + $0x18] sm:$0xff]
    %s1014 = scalar_lea.vmem [#allocation5], 8
    %v1015 = vld [vmem:[%s1014] sm:$0xff]
    %v1016 = vperm.slane %v1015, 0
    %v1018 = vsel %vm66, %v1007, 0
    %v1021 = vsel %vm66, %v1008, 0
    %1023 = vmatpush.msra.mxu0 0.0
    %1024 = vmatpush.msra.mxu0 0.0
    %1025 = vmatpush.msra.mxu0 0.0
    %1026 = vmatpush.msra.mxu0 0.0
    %1027 = vmatpush.msra.mxu0 0.0
    %1028 = vmatpush.msra.mxu0 0.0
    %1029 = vmatpush.msra.mxu0 0.0
    %1030 = vmatpush.msra.mxu0 0.0
    %1031 = vmatpush.msra.mxu0 0.0
    %1032 = vmatpush.msra.mxu0 0.0
    %1033 = vmatpush.msra.mxu0 0.0
    %1034 = vmatpush.msra.mxu0 0.0
    %1035 = vmatpush.msra.mxu0 %v1013
    %1036 = vmatpush.msra.mxu0 %v1012
    %1037 = vmatpush.msra.mxu0 %v1011
    %1038 = vmatpush.msra.mxu0 %v1010
    %1039 = vmatmul.f32.gmra.mxu0 %v1018
    %v1040 = vpop.f32.mrf.mxu0
    %v1041 = vadd.f32 %v1016, %v1040
    %1042 = vmatmul.f32.gmra.mxu0 %v1021
    %v1043 = vpop.f32.mrf.mxu0
    %v1044 = vadd.f32 %v1016, %v1043
    %1045 = vdwg.mxu0
    %v1046 = vmul.f32 %v1041, 0.35355338
    %v1047 = vmul.f32 %v1044, 0.35355338
    %1049 = vrot.lane.b32.xlu0 %v1041, 96
    %v1050 = vpop.permute.xlu0 %1049
    %v1052 = vsel %vm101, %v1046, 0
    %v1054 = vsel %vm101, %v1050, 0
    %1056 = vmatpush.xpose.msra.mxu0 0.0
    %1057 = vmatpush.xpose.msra.mxu0 0.0
    %1058 = vmatpush.xpose.msra.mxu0 0.0
    %1059 = vmatpush.xpose.msra.mxu0 0.0
    %1060 = vmatpush.xpose.msra.mxu0 0.0
    %1061 = vmatpush.xpose.msra.mxu0 0.0
    %1062 = vmatpush.xpose.msra.mxu0 0.0
    %1063 = vmatpush.xpose.msra.mxu0 0.0
    %1064 = vmatpush.xpose.msra.mxu0 0.0
    %1065 = vmatpush.xpose.msra.mxu0 0.0
    %1066 = vmatpush.xpose.msra.mxu0 0.0
    %1067 = vmatpush.xpose.msra.mxu0 0.0
    %1068 = vmatpush.xpose.msra.mxu0 0.0
    %1069 = vmatpush.xpose.msra.mxu0 0.0
    %1070 = vmatpush.xpose.msra.mxu0 0.0
    %1071 = vmatpush.xpose.msra.mxu0 %v1054
    %1072 = vmatmul.f32.gmra.mxu0 %v1052
    %v1073 = vpop.f32.mrf.mxu0
    %v1074 = vadd.f32 0.0, %v1073
    %1075 = vdwg.mxu0
    %1077 = vrot.lane.b32.xlu0 %v1044, 96
    %v1078 = vpop.permute.xlu0 %1077
    %v1080 = vsel %vm101, %v1047, 0
    %v1082 = vsel %vm101, %v1078, 0
    %1084 = vmatpush.xpose.msra.mxu0 0.0
    %1085 = vmatpush.xpose.msra.mxu0 0.0
    %1086 = vmatpush.xpose.msra.mxu0 0.0
    %1087 = vmatpush.xpose.msra.mxu0 0.0
    %1088 = vmatpush.xpose.msra.mxu0 0.0
    %1089 = vmatpush.xpose.msra.mxu0 0.0
    %1090 = vmatpush.xpose.msra.mxu0 0.0
    %1091 = vmatpush.xpose.msra.mxu0 0.0
    %1092 = vmatpush.xpose.msra.mxu0 0.0
    %1093 = vmatpush.xpose.msra.mxu0 0.0
    %1094 = vmatpush.xpose.msra.mxu0 0.0
    %1095 = vmatpush.xpose.msra.mxu0 0.0
    %1096 = vmatpush.xpose.msra.mxu0 0.0
    %1097 = vmatpush.xpose.msra.mxu0 0.0
    %1098 = vmatpush.xpose.msra.mxu0 0.0
    %1099 = vmatpush.xpose.msra.mxu0 %v1082
    %1100 = vmatmul.f32.gmra.mxu0 %v1080
    %v1101 = vpop.f32.mrf.mxu0
    %v1102 = vadd.f32 0.0, %v1101
    %1103 = vdwg.mxu0
    %v1104 = vsel %vm101, %v1074, -inf
    %1105 = vmax.xlane.f32.xlu0 %v1104
    %v1106 = vpop.xlane.xlu0 %1105
    %v1107 = vsel %vm101, %v1102, -inf
    %1108 = vmax.xlane.f32.xlu0 %v1107
    %v1109 = vpop.xlane.xlu0 %1108
    %v1110 = vsub.f32 %v1074, %v1106
    %v1111 = vsub.f32 %v1102, %v1109
    %v1112 = vmul.f32 %v1110, 1.442695
    %v1113 = vpow.pop %v1112
    %v1114 = vmul.f32 %v1111, 1.442695
    %v1115 = vpow.pop %v1114
    %v1116 = vsel %vm101, %v1113, 0.0
    %1117 = vadd.xlane.f32.xlu0 %v1116
    %v1118 = vpop.xlane.xlu0 %1117
    %v1119 = vsel %vm101, %v1115, 0.0
    %1120 = vadd.xlane.f32.xlu0 %v1119
    %v1121 = vpop.xlane.xlu0 %1120
    %v1122 = vrcp.pop %v1118
    %v1123 = vmul.f32 %v1118, %v1122
    %v1124 = vsub.f32 1.0, %v1123
    %v1125 = vmul.f32 %v1122, %v1124
    %v1126 = vadd.f32 %v1122, %v1125
    %vm1127 = vweird.f32 %v1118
    %vm1128 = vweird.f32 %v1122
    %vm1129 = vmor %vm1127, %vm1128
    %v1130 = vsel %vm1129, %v1122, %v1126
    %v1131 = vand.u32 2147483647, %v1118
    %vm1132 = vcmp.eq.f32.partialorder %v1131, 8.507059e+37
    %v1133 = vand.u32 %v1118, 2147483648
    %v1134 = vor.u32 1.1754944e-38, %v1133
    %v1135 = vsel %vm1132, %v1134, %v1130
    %v1136 = vmul.f32 1.0, %v1135
    %v1137 = vrcp.pop %v1121
    %v1138 = vmul.f32 %v1121, %v1137
    %v1139 = vsub.f32 1.0, %v1138
    %v1140 = vmul.f32 %v1137, %v1139
    %v1141 = vadd.f32 %v1137, %v1140
    %vm1142 = vweird.f32 %v1121
    %vm1143 = vweird.f32 %v1137
    %vm1144 = vmor %vm1142, %vm1143
    %v1145 = vsel %vm1144, %v1137, %v1141
    %v1146 = vand.u32 2147483647, %v1121
    %vm1147 = vcmp.eq.f32.partialorder %v1146, 8.507059e+37
    %v1148 = vand.u32 %v1121, 2147483648
    %v1149 = vor.u32 1.1754944e-38, %v1148
    %v1150 = vsel %vm1147, %v1149, %v1145
    %v1151 = vmul.f32 1.0, %v1150
    %v1152 = vmul.f32 %v1113, %v1136
    %v1153 = vmul.f32 %v1115, %v1151
    %1154 = vrot.lane.b32.xlu0 %v1041, 64
    %v1155 = vpop.permute.xlu0 %1154
    %v1158 = vsel %vm101, %v1152, 0
    %1160 = vmatpush.msra.mxu0 0.0
    %1161 = vmatpush.msra.mxu0 0.0
    %1162 = vmatpush.msra.mxu0 0.0
    %1163 = vmatpush.msra.mxu0 0.0
    %1164 = vmatpush.msra.mxu0 0.0
    %1165 = vmatpush.msra.mxu0 0.0
    %1166 = vmatpush.msra.mxu0 0.0
    %1167 = vmatpush.msra.mxu0 0.0
    %1168 = vmatpush.msra.mxu0 0.0
    %1169 = vmatpush.msra.mxu0 0.0
    %1170 = vmatpush.msra.mxu0 0.0
    %1171 = vmatpush.msra.mxu0 0.0
    %1172 = vmatpush.msra.mxu0 0.0
    %1173 = vmatpush.msra.mxu0 0.0
    %1174 = vmatpush.msra.mxu0 0.0
    %1175 = vmatpush.msra.mxu0 %v1155
    %1176 = vmatmul.f32.gmra.mxu0 %v1158
    %v1177 = vpop.f32.mrf.mxu0
    %v1178 = vadd.f32 0.0, %v1177
    %1179 = vdwg.mxu0
    %1180 = vrot.lane.b32.xlu0 %v1044, 64
    %v1181 = vpop.permute.xlu0 %1180
    %v1184 = vsel %vm101, %v1153, 0
    %1186 = vmatpush.msra.mxu0 0.0
    %1187 = vmatpush.msra.mxu0 0.0
    %1188 = vmatpush.msra.mxu0 0.0
    %1189 = vmatpush.msra.mxu0 0.0
    %1190 = vmatpush.msra.mxu0 0.0
    %1191 = vmatpush.msra.mxu0 0.0
    %1192 = vmatpush.msra.mxu0 0.0
    %1193 = vmatpush.msra.mxu0 0.0
    %1194 = vmatpush.msra.mxu0 0.0
    %1195 = vmatpush.msra.mxu0 0.0
    %1196 = vmatpush.msra.mxu0 0.0
    %1197 = vmatpush.msra.mxu0 0.0
    %1198 = vmatpush.msra.mxu0 0.0
    %1199 = vmatpush.msra.mxu0 0.0
    %1200 = vmatpush.msra.mxu0 0.0
    %1201 = vmatpush.msra.mxu0 %v1181
    %1202 = vmatmul.f32.gmra.mxu0 %v1184
    %v1203 = vpop.f32.mrf.mxu0
    %v1204 = vadd.f32 0.0, %v1203
    %1205 = vdwg.mxu0
    %1206 = vrot.lane.b32.xlu0 %v1046, 120
    %v1207 = vpop.permute.xlu0 %1206
    %1208 = vrot.lane.b32.xlu0 %v1041, 88
    %v1209 = vpop.permute.xlu0 %1208
    %v1210 = vsel %vm101, %v1207, 0
    %v1212 = vsel %vm101, %v1209, 0
    %1214 = vmatpush.xpose.msra.mxu0 0.0
    %1215 = vmatpush.xpose.msra.mxu0 0.0
    %1216 = vmatpush.xpose.msra.mxu0 0.0
    %1217 = vmatpush.xpose.msra.mxu0 0.0
    %1218 = vmatpush.xpose.msra.mxu0 0.0
    %1219 = vmatpush.xpose.msra.mxu0 0.0
    %1220 = vmatpush.xpose.msra.mxu0 0.0
    %1221 = vmatpush.xpose.msra.mxu0 0.0
    %1222 = vmatpush.xpose.msra.mxu0 0.0
    %1223 = vmatpush.xpose.msra.mxu0 0.0
    %1224 = vmatpush.xpose.msra.mxu0 0.0
    %1225 = vmatpush.xpose.msra.mxu0 0.0
    %1226 = vmatpush.xpose.msra.mxu0 0.0
    %1227 = vmatpush.xpose.msra.mxu0 0.0
    %1228 = vmatpush.xpose.msra.mxu0 0.0
    %1229 = vmatpush.xpose.msra.mxu0 %v1212
    %1230 = vmatmul.f32.gmra.mxu0 %v1210
    %v1231 = vpop.f32.mrf.mxu0
    %v1232 = vadd.f32 0.0, %v1231
    %1233 = vdwg.mxu0
    %1234 = vrot.lane.b32.xlu0 %v1047, 120
    %v1235 = vpop.permute.xlu0 %1234
    %1236 = vrot.lane.b32.xlu0 %v1044, 88
    %v1237 = vpop.permute.xlu0 %1236
    %v1238 = vsel %vm101, %v1235, 0
    %v1240 = vsel %vm101, %v1237, 0
    %1242 = vmatpush.xpose.msra.mxu0 0.0
    %1243 = vmatpush.xpose.msra.mxu0 0.0
    %1244 = vmatpush.xpose.msra.mxu0 0.0
    %1245 = vmatpush.xpose.msra.mxu0 0.0
    %1246 = vmatpush.xpose.msra.mxu0 0.0
    %1247 = vmatpush.xpose.msra.mxu0 0.0
    %1248 = vmatpush.xpose.msra.mxu0 0.0
    %1249 = vmatpush.xpose.msra.mxu0 0.0
    %1250 = vmatpush.xpose.msra.mxu0 0.0
    %1251 = vmatpush.xpose.msra.mxu0 0.0
    %1252 = vmatpush.xpose.msra.mxu0 0.0
    %1253 = vmatpush.xpose.msra.mxu0 0.0
    %1254 = vmatpush.xpose.msra.mxu0 0.0
    %1255 = vmatpush.xpose.msra.mxu0 0.0
    %1256 = vmatpush.xpose.msra.mxu0 0.0
    %1257 = vmatpush.xpose.msra.mxu0 %v1240
    %1258 = vmatmul.f32.gmra.mxu0 %v1238
    %v1259 = vpop.f32.mrf.mxu0
    %v1260 = vadd.f32 0.0, %v1259
    %1261 = vdwg.mxu0
    %v1262 = vsel %vm101, %v1232, -inf
    %1263 = vmax.xlane.f32.xlu0 %v1262
    %v1264 = vpop.xlane.xlu0 %1263
    %v1265 = vsel %vm101, %v1260, -inf
    %1266 = vmax.xlane.f32.xlu0 %v1265
    %v1267 = vpop.xlane.xlu0 %1266
    %v1268 = vsub.f32 %v1232, %v1264
    %v1269 = vsub.f32 %v1260, %v1267
    %v1270 = vmul.f32 %v1268, 1.442695
    %v1271 = vpow.pop %v1270
    %v1272 = vmul.f32 %v1269, 1.442695
    %v1273 = vpow.pop %v1272
    %v1274 = vsel %vm101, %v1271, 0.0
    %1275 = vadd.xlane.f32.xlu0 %v1274
    %v1276 = vpop.xlane.xlu0 %1275
    %v1277 = vsel %vm101, %v1273, 0.0
    %1278 = vadd.xlane.f32.xlu0 %v1277
    %v1279 = vpop.xlane.xlu0 %1278
    %v1280 = vrcp.pop %v1276
    %v1281 = vmul.f32 %v1276, %v1280
    %v1282 = vsub.f32 1.0, %v1281
    %v1283 = vmul.f32 %v1280, %v1282
    %v1284 = vadd.f32 %v1280, %v1283
    %vm1285 = vweird.f32 %v1276
    %vm1286 = vweird.f32 %v1280
    %vm1287 = vmor %vm1285, %vm1286
    %v1288 = vsel %vm1287, %v1280, %v1284
    %v1289 = vand.u32 2147483647, %v1276
    %vm1290 = vcmp.eq.f32.partialorder %v1289, 8.507059e+37
    %v1291 = vand.u32 %v1276, 2147483648
    %v1292 = vor.u32 1.1754944e-38, %v1291
    %v1293 = vsel %vm1290, %v1292, %v1288
    %v1294 = vmul.f32 1.0, %v1293
    %v1295 = vrcp.pop %v1279
    %v1296 = vmul.f32 %v1279, %v1295
    %v1297 = vsub.f32 1.0, %v1296
    %v1298 = vmul.f32 %v1295, %v1297
    %v1299 = vadd.f32 %v1295, %v1298
    %vm1300 = vweird.f32 %v1279
    %vm1301 = vweird.f32 %v1295
    %vm1302 = vmor %vm1300, %vm1301
    %v1303 = vsel %vm1302, %v1295, %v1299
    %v1304 = vand.u32 2147483647, %v1279
    %vm1305 = vcmp.eq.f32.partialorder %v1304, 8.507059e+37
    %v1306 = vand.u32 %v1279, 2147483648
    %v1307 = vor.u32 1.1754944e-38, %v1306
    %v1308 = vsel %vm1305, %v1307, %v1303
    %v1309 = vmul.f32 1.0, %v1308
    %v1310 = vmul.f32 %v1271, %v1294
    %v1311 = vmul.f32 %v1273, %v1309
    %1312 = vrot.lane.b32.xlu0 %v1041, 56
    %v1313 = vpop.permute.xlu0 %1312
    %v1316 = vsel %vm101, %v1310, 0
    %1318 = vmatpush.msra.mxu0 0.0
    %1319 = vmatpush.msra.mxu0 0.0
    %1320 = vmatpush.msra.mxu0 0.0
    %1321 = vmatpush.msra.mxu0 0.0
    %1322 = vmatpush.msra.mxu0 0.0
    %1323 = vmatpush.msra.mxu0 0.0
    %1324 = vmatpush.msra.mxu0 0.0
    %1325 = vmatpush.msra.mxu0 0.0
    %1326 = vmatpush.msra.mxu0 0.0
    %1327 = vmatpush.msra.mxu0 0.0
    %1328 = vmatpush.msra.mxu0 0.0
    %1329 = vmatpush.msra.mxu0 0.0
    %1330 = vmatpush.msra.mxu0 0.0
    %1331 = vmatpush.msra.mxu0 0.0
    %1332 = vmatpush.msra.mxu0 0.0
    %1333 = vmatpush.msra.mxu0 %v1313
    %1334 = vmatmul.f32.gmra.mxu0 %v1316
    %v1335 = vpop.f32.mrf.mxu0
    %v1336 = vadd.f32 0.0, %v1335
    %1337 = vdwg.mxu0
    %1338 = vrot.lane.b32.xlu0 %v1044, 56
    %v1339 = vpop.permute.xlu0 %1338
    %v1342 = vsel %vm101, %v1311, 0
    %1344 = vmatpush.msra.mxu0 0.0
    %1345 = vmatpush.msra.mxu0 0.0
    %1346 = vmatpush.msra.mxu0 0.0
    %1347 = vmatpush.msra.mxu0 0.0
    %1348 = vmatpush.msra.mxu0 0.0
    %1349 = vmatpush.msra.mxu0 0.0
    %1350 = vmatpush.msra.mxu0 0.0
    %1351 = vmatpush.msra.mxu0 0.0
    %1352 = vmatpush.msra.mxu0 0.0
    %1353 = vmatpush.msra.mxu0 0.0
    %1354 = vmatpush.msra.mxu0 0.0
    %1355 = vmatpush.msra.mxu0 0.0
    %1356 = vmatpush.msra.mxu0 0.0
    %1357 = vmatpush.msra.mxu0 0.0
    %1358 = vmatpush.msra.mxu0 0.0
    %1359 = vmatpush.msra.mxu0 %v1339
    %1360 = vmatmul.f32.gmra.mxu0 %v1342
    %v1361 = vpop.f32.mrf.mxu0
    %v1362 = vadd.f32 0.0, %v1361
    %1363 = vdwg.mxu0
    %1364 = vrot.lane.b32.xlu0 %v1046, 112
    %v1365 = vpop.permute.xlu0 %1364
    %1366 = vrot.lane.b32.xlu0 %v1041, 80
    %v1367 = vpop.permute.xlu0 %1366
    %v1368 = vsel %vm101, %v1365, 0
    %v1370 = vsel %vm101, %v1367, 0
    %1372 = vmatpush.xpose.msra.mxu0 0.0
    %1373 = vmatpush.xpose.msra.mxu0 0.0
    %1374 = vmatpush.xpose.msra.mxu0 0.0
    %1375 = vmatpush.xpose.msra.mxu0 0.0
    %1376 = vmatpush.xpose.msra.mxu0 0.0
    %1377 = vmatpush.xpose.msra.mxu0 0.0
    %1378 = vmatpush.xpose.msra.mxu0 0.0
    %1379 = vmatpush.xpose.msra.mxu0 0.0
    %1380 = vmatpush.xpose.msra.mxu0 0.0
    %1381 = vmatpush.xpose.msra.mxu0 0.0
    %1382 = vmatpush.xpose.msra.mxu0 0.0
    %1383 = vmatpush.xpose.msra.mxu0 0.0
    %1384 = vmatpush.xpose.msra.mxu0 0.0
    %1385 = vmatpush.xpose.msra.mxu0 0.0
    %1386 = vmatpush.xpose.msra.mxu0 0.0
    %1387 = vmatpush.xpose.msra.mxu0 %v1370
    %1388 = vmatmul.f32.gmra.mxu0 %v1368
    %v1389 = vpop.f32.mrf.mxu0
    %v1390 = vadd.f32 0.0, %v1389
    %1391 = vdwg.mxu0
    %1392 = vrot.lane.b32.xlu0 %v1047, 112
    %v1393 = vpop.permute.xlu0 %1392
    %1394 = vrot.lane.b32.xlu0 %v1044, 80
    %v1395 = vpop.permute.xlu0 %1394
    %v1396 = vsel %vm101, %v1393, 0
    %v1398 = vsel %vm101, %v1395, 0
    %1400 = vmatpush.xpose.msra.mxu0 0.0
    %1401 = vmatpush.xpose.msra.mxu0 0.0
    %1402 = vmatpush.xpose.msra.mxu0 0.0
    %1403 = vmatpush.xpose.msra.mxu0 0.0
    %1404 = vmatpush.xpose.msra.mxu0 0.0
    %1405 = vmatpush.xpose.msra.mxu0 0.0
    %1406 = vmatpush.xpose.msra.mxu0 0.0
    %1407 = vmatpush.xpose.msra.mxu0 0.0
    %1408 = vmatpush.xpose.msra.mxu0 0.0
    %1409 = vmatpush.xpose.msra.mxu0 0.0
    %1410 = vmatpush.xpose.msra.mxu0 0.0
    %1411 = vmatpush.xpose.msra.mxu0 0.0
    %1412 = vmatpush.xpose.msra.mxu0 0.0
    %1413 = vmatpush.xpose.msra.mxu0 0.0
    %1414 = vmatpush.xpose.msra.mxu0 0.0
    %1415 = vmatpush.xpose.msra.mxu0 %v1398
    %1416 = vmatmul.f32.gmra.mxu0 %v1396
    %v1417 = vpop.f32.mrf.mxu0
    %v1418 = vadd.f32 0.0, %v1417
    %1419 = vdwg.mxu0
    %v1420 = vsel %vm101, %v1390, -inf
    %1421 = vmax.xlane.f32.xlu0 %v1420
    %v1422 = vpop.xlane.xlu0 %1421
    %v1423 = vsel %vm101, %v1418, -inf
    %1424 = vmax.xlane.f32.xlu0 %v1423
    %v1425 = vpop.xlane.xlu0 %1424
    %v1426 = vsub.f32 %v1390, %v1422
    %v1427 = vsub.f32 %v1418, %v1425
    %v1428 = vmul.f32 %v1426, 1.442695
    %v1429 = vpow.pop %v1428
    %v1430 = vmul.f32 %v1427, 1.442695
    %v1431 = vpow.pop %v1430
    %v1432 = vsel %vm101, %v1429, 0.0
    %1433 = vadd.xlane.f32.xlu0 %v1432
    %v1434 = vpop.xlane.xlu0 %1433
    %v1435 = vsel %vm101, %v1431, 0.0
    %1436 = vadd.xlane.f32.xlu0 %v1435
    %v1437 = vpop.xlane.xlu0 %1436
    %v1438 = vrcp.pop %v1434
    %v1439 = vmul.f32 %v1434, %v1438
    %v1440 = vsub.f32 1.0, %v1439
    %v1441 = vmul.f32 %v1438, %v1440
    %v1442 = vadd.f32 %v1438, %v1441
    %vm1443 = vweird.f32 %v1434
    %vm1444 = vweird.f32 %v1438
    %vm1445 = vmor %vm1443, %vm1444
    %v1446 = vsel %vm1445, %v1438, %v1442
    %v1447 = vand.u32 2147483647, %v1434
    %vm1448 = vcmp.eq.f32.partialorder %v1447, 8.507059e+37
    %v1449 = vand.u32 %v1434, 2147483648
    %v1450 = vor.u32 1.1754944e-38, %v1449
    %v1451 = vsel %vm1448, %v1450, %v1446
    %v1452 = vmul.f32 1.0, %v1451
    %v1453 = vrcp.pop %v1437
    %v1454 = vmul.f32 %v1437, %v1453
    %v1455 = vsub.f32 1.0, %v1454
    %v1456 = vmul.f32 %v1453, %v1455
    %v1457 = vadd.f32 %v1453, %v1456
    %vm1458 = vweird.f32 %v1437
    %vm1459 = vweird.f32 %v1453
    %vm1460 = vmor %vm1458, %vm1459
    %v1461 = vsel %vm1460, %v1453, %v1457
    %v1462 = vand.u32 2147483647, %v1437
    %vm1463 = vcmp.eq.f32.partialorder %v1462, 8.507059e+37
    %v1464 = vand.u32 %v1437, 2147483648
    %v1465 = vor.u32 1.1754944e-38, %v1464
    %v1466 = vsel %vm1463, %v1465, %v1461
    %v1467 = vmul.f32 1.0, %v1466
    %v1468 = vmul.f32 %v1429, %v1452
    %v1469 = vmul.f32 %v1431, %v1467
    %1470 = vrot.lane.b32.xlu0 %v1041, 48
    %v1471 = vpop.permute.xlu0 %1470
    %v1474 = vsel %vm101, %v1468, 0
    %1476 = vmatpush.msra.mxu0 0.0
    %1477 = vmatpush.msra.mxu0 0.0
    %1478 = vmatpush.msra.mxu0 0.0
    %1479 = vmatpush.msra.mxu0 0.0
    %1480 = vmatpush.msra.mxu0 0.0
    %1481 = vmatpush.msra.mxu0 0.0
    %1482 = vmatpush.msra.mxu0 0.0
    %1483 = vmatpush.msra.mxu0 0.0
    %1484 = vmatpush.msra.mxu0 0.0
    %1485 = vmatpush.msra.mxu0 0.0
    %1486 = vmatpush.msra.mxu0 0.0
    %1487 = vmatpush.msra.mxu0 0.0
    %1488 = vmatpush.msra.mxu0 0.0
    %1489 = vmatpush.msra.mxu0 0.0
    %1490 = vmatpush.msra.mxu0 0.0
    %1491 = vmatpush.msra.mxu0 %v1471
    %1492 = vmatmul.f32.gmra.mxu0 %v1474
    %v1493 = vpop.f32.mrf.mxu0
    %v1494 = vadd.f32 0.0, %v1493
    %1495 = vdwg.mxu0
    %1496 = vrot.lane.b32.xlu0 %v1044, 48
    %v1497 = vpop.permute.xlu0 %1496
    %v1500 = vsel %vm101, %v1469, 0
    %1502 = vmatpush.msra.mxu0 0.0
    %1503 = vmatpush.msra.mxu0 0.0
    %1504 = vmatpush.msra.mxu0 0.0
    %1505 = vmatpush.msra.mxu0 0.0
    %1506 = vmatpush.msra.mxu0 0.0
    %1507 = vmatpush.msra.mxu0 0.0
    %1508 = vmatpush.msra.mxu0 0.0
    %1509 = vmatpush.msra.mxu0 0.0
    %1510 = vmatpush.msra.mxu0 0.0
    %1511 = vmatpush.msra.mxu0 0.0
    %1512 = vmatpush.msra.mxu0 0.0
    %1513 = vmatpush.msra.mxu0 0.0
    %1514 = vmatpush.msra.mxu0 0.0
    %1515 = vmatpush.msra.mxu0 0.0
    %1516 = vmatpush.msra.mxu0 0.0
    %1517 = vmatpush.msra.mxu0 %v1497
    %1518 = vmatmul.f32.gmra.mxu0 %v1500
    %v1519 = vpop.f32.mrf.mxu0
    %v1520 = vadd.f32 0.0, %v1519
    %1521 = vdwg.mxu0
    %1522 = vrot.lane.b32.xlu0 %v1046, 104
    %v1523 = vpop.permute.xlu0 %1522
    %1524 = vrot.lane.b32.xlu0 %v1041, 72
    %v1525 = vpop.permute.xlu0 %1524
    %v1526 = vsel %vm101, %v1523, 0
    %v1528 = vsel %vm101, %v1525, 0
    %1530 = vmatpush.xpose.msra.mxu0 0.0
    %1531 = vmatpush.xpose.msra.mxu0 0.0
    %1532 = vmatpush.xpose.msra.mxu0 0.0
    %1533 = vmatpush.xpose.msra.mxu0 0.0
    %1534 = vmatpush.xpose.msra.mxu0 0.0
    %1535 = vmatpush.xpose.msra.mxu0 0.0
    %1536 = vmatpush.xpose.msra.mxu0 0.0
    %1537 = vmatpush.xpose.msra.mxu0 0.0
    %1538 = vmatpush.xpose.msra.mxu0 0.0
    %1539 = vmatpush.xpose.msra.mxu0 0.0
    %1540 = vmatpush.xpose.msra.mxu0 0.0
    %1541 = vmatpush.xpose.msra.mxu0 0.0
    %1542 = vmatpush.xpose.msra.mxu0 0.0
    %1543 = vmatpush.xpose.msra.mxu0 0.0
    %1544 = vmatpush.xpose.msra.mxu0 0.0
    %1545 = vmatpush.xpose.msra.mxu0 %v1528
    %1546 = vmatmul.f32.gmra.mxu0 %v1526
    %v1547 = vpop.f32.mrf.mxu0
    %v1548 = vadd.f32 0.0, %v1547
    %1549 = vdwg.mxu0
    %1550 = vrot.lane.b32.xlu0 %v1047, 104
    %v1551 = vpop.permute.xlu0 %1550
    %1552 = vrot.lane.b32.xlu0 %v1044, 72
    %v1553 = vpop.permute.xlu0 %1552
    %v1554 = vsel %vm101, %v1551, 0
    %v1556 = vsel %vm101, %v1553, 0
    %1558 = vmatpush.xpose.msra.mxu0 0.0
    %1559 = vmatpush.xpose.msra.mxu0 0.0
    %1560 = vmatpush.xpose.msra.mxu0 0.0
    %1561 = vmatpush.xpose.msra.mxu0 0.0
    %1562 = vmatpush.xpose.msra.mxu0 0.0
    %1563 = vmatpush.xpose.msra.mxu0 0.0
    %1564 = vmatpush.xpose.msra.mxu0 0.0
    %1565 = vmatpush.xpose.msra.mxu0 0.0
    %1566 = vmatpush.xpose.msra.mxu0 0.0
    %1567 = vmatpush.xpose.msra.mxu0 0.0
    %1568 = vmatpush.xpose.msra.mxu0 0.0
    %1569 = vmatpush.xpose.msra.mxu0 0.0
    %1570 = vmatpush.xpose.msra.mxu0 0.0
    %1571 = vmatpush.xpose.msra.mxu0 0.0
    %1572 = vmatpush.xpose.msra.mxu0 0.0
    %1573 = vmatpush.xpose.msra.mxu0 %v1556
    %1574 = vmatmul.f32.gmra.mxu0 %v1554
    %v1575 = vpop.f32.mrf.mxu0
    %v1576 = vadd.f32 0.0, %v1575
    %1577 = vdwg.mxu0
    %v1578 = vsel %vm101, %v1548, -inf
    %1579 = vmax.xlane.f32.xlu0 %v1578
    %v1580 = vpop.xlane.xlu0 %1579
    %v1581 = vsel %vm101, %v1576, -inf
    %1582 = vmax.xlane.f32.xlu0 %v1581
    %v1583 = vpop.xlane.xlu0 %1582
    %v1584 = vsub.f32 %v1548, %v1580
    %v1585 = vsub.f32 %v1576, %v1583
    %v1586 = vmul.f32 %v1584, 1.442695
    %v1587 = vpow.pop %v1586
    %v1588 = vmul.f32 %v1585, 1.442695
    %v1589 = vpow.pop %v1588
    %v1590 = vsel %vm101, %v1587, 0.0
    %1591 = vadd.xlane.f32.xlu0 %v1590
    %v1592 = vpop.xlane.xlu0 %1591
    %v1593 = vsel %vm101, %v1589, 0.0
    %1594 = vadd.xlane.f32.xlu0 %v1593
    %v1595 = vpop.xlane.xlu0 %1594
    %v1596 = vrcp.pop %v1592
    %v1597 = vmul.f32 %v1592, %v1596
    %v1598 = vsub.f32 1.0, %v1597
    %v1599 = vmul.f32 %v1596, %v1598
    %v1600 = vadd.f32 %v1596, %v1599
    %vm1601 = vweird.f32 %v1592
    %vm1602 = vweird.f32 %v1596
    %vm1603 = vmor %vm1601, %vm1602
    %v1604 = vsel %vm1603, %v1596, %v1600
    %v1605 = vand.u32 2147483647, %v1592
    %vm1606 = vcmp.eq.f32.partialorder %v1605, 8.507059e+37
    %v1607 = vand.u32 %v1592, 2147483648
    %v1608 = vor.u32 1.1754944e-38, %v1607
    %v1609 = vsel %vm1606, %v1608, %v1604
    %v1610 = vmul.f32 1.0, %v1609
    %v1611 = vrcp.pop %v1595
    %v1612 = vmul.f32 %v1595, %v1611
    %v1613 = vsub.f32 1.0, %v1612
    %v1614 = vmul.f32 %v1611, %v1613
    %v1615 = vadd.f32 %v1611, %v1614
    %vm1616 = vweird.f32 %v1595
    %vm1617 = vweird.f32 %v1611
    %vm1618 = vmor %vm1616, %vm1617
    %v1619 = vsel %vm1618, %v1611, %v1615
    %v1620 = vand.u32 2147483647, %v1595
    %vm1621 = vcmp.eq.f32.partialorder %v1620, 8.507059e+37
    %v1622 = vand.u32 %v1595, 2147483648
    %v1623 = vor.u32 1.1754944e-38, %v1622
    %v1624 = vsel %vm1621, %v1623, %v1619
    %v1625 = vmul.f32 1.0, %v1624
    %v1626 = vmul.f32 %v1587, %v1610
    %v1627 = vmul.f32 %v1589, %v1625
    %1628 = vrot.lane.b32.xlu0 %v1041, 40
    %v1629 = vpop.permute.xlu0 %1628
    %v1632 = vsel %vm101, %v1626, 0
    %1634 = vmatpush.msra.mxu0 0.0
    %1635 = vmatpush.msra.mxu0 0.0
    %1636 = vmatpush.msra.mxu0 0.0
    %1637 = vmatpush.msra.mxu0 0.0
    %1638 = vmatpush.msra.mxu0 0.0
    %1639 = vmatpush.msra.mxu0 0.0
    %1640 = vmatpush.msra.mxu0 0.0
    %1641 = vmatpush.msra.mxu0 0.0
    %1642 = vmatpush.msra.mxu0 0.0
    %1643 = vmatpush.msra.mxu0 0.0
    %1644 = vmatpush.msra.mxu0 0.0
    %1645 = vmatpush.msra.mxu0 0.0
    %1646 = vmatpush.msra.mxu0 0.0
    %1647 = vmatpush.msra.mxu0 0.0
    %1648 = vmatpush.msra.mxu0 0.0
    %1649 = vmatpush.msra.mxu0 %v1629
    %1650 = vmatmul.f32.gmra.mxu0 %v1632
    %v1651 = vpop.f32.mrf.mxu0
    %v1652 = vadd.f32 0.0, %v1651
    %1653 = vdwg.mxu0
    %1654 = vrot.lane.b32.xlu0 %v1044, 40
    %v1655 = vpop.permute.xlu0 %1654
    %v1658 = vsel %vm101, %v1627, 0
    %1660 = vmatpush.msra.mxu0 0.0
    %1661 = vmatpush.msra.mxu0 0.0
    %1662 = vmatpush.msra.mxu0 0.0
    %1663 = vmatpush.msra.mxu0 0.0
    %1664 = vmatpush.msra.mxu0 0.0
    %1665 = vmatpush.msra.mxu0 0.0
    %1666 = vmatpush.msra.mxu0 0.0
    %1667 = vmatpush.msra.mxu0 0.0
    %1668 = vmatpush.msra.mxu0 0.0
    %1669 = vmatpush.msra.mxu0 0.0
    %1670 = vmatpush.msra.mxu0 0.0
    %1671 = vmatpush.msra.mxu0 0.0
    %1672 = vmatpush.msra.mxu0 0.0
    %1673 = vmatpush.msra.mxu0 0.0
    %1674 = vmatpush.msra.mxu0 0.0
    %1675 = vmatpush.msra.mxu0 %v1655
    %1676 = vmatmul.f32.gmra.mxu0 %v1658
    %v1677 = vpop.f32.mrf.mxu0
    %v1678 = vadd.f32 0.0, %v1677
    %1679 = vdwg.mxu0
    %1680 = vrot.lane.b32.xlu0 %v1310, 8
    %v1681 = vpop.permute.xlu0 %1680
    %1682 = vrot.lane.b32.xlu0 %v1311, 8
    %v1683 = vpop.permute.xlu0 %1682
    %1686 = vrot.lane.b32.xlu0 %v1468, 16
    %v1687 = vpop.permute.xlu0 %1686
    %1688 = vrot.lane.b32.xlu0 %v1469, 16
    %v1689 = vpop.permute.xlu0 %1688
    %1692 = vrot.lane.b32.xlu0 %v1626, 24
    %v1693 = vpop.permute.xlu0 %1692
    %1694 = vrot.lane.b32.xlu0 %v1627, 24
    %v1695 = vpop.permute.xlu0 %1694
    %v1698 = vsel %vm101, %v1152, %v1681
    %v1699 = vsel %vm101, %v1153, %v1683
    %v1700 = vsel %vm751, %v1698, %v1687
    %v1701 = vsel %vm751, %v1699, %v1689
    %v1702 = vsel %vm754, %v1700, %v1693
    %v1703 = vsel %vm754, %v1701, %v1695
    %s1704 = scalar_lea.vmem %s7, 16
    %1705 = vst.msk [vmem:[%s1704] sm:$0xff] %vm66, %v1702
    %1706 = vst.msk [vmem:[%s1704 + $0x8] sm:$0xff] %vm66, %v1703
    %1709 = vrot.lane.b32.xlu0 %v1336, 8
    %v1710 = vpop.permute.xlu0 %1709
    %1711 = vrot.lane.b32.xlu0 %v1362, 8
    %v1712 = vpop.permute.xlu0 %1711
    %1717 = vrot.lane.b32.xlu0 %v1494, 16
    %v1718 = vpop.permute.xlu0 %1717
    %1719 = vrot.lane.b32.xlu0 %v1520, 16
    %v1720 = vpop.permute.xlu0 %1719
    %1725 = vrot.lane.b32.xlu0 %v1652, 24
    %v1726 = vpop.permute.xlu0 %1725
    %1727 = vrot.lane.b32.xlu0 %v1678, 24
    %v1728 = vpop.permute.xlu0 %1727
    %v1731 = vsel %vm101, %v1178, %v1710
    %v1732 = vsel %vm101, %v1204, %v1712
    %v1733 = vsel %vm751, %v1731, %v1718
    %v1734 = vsel %vm751, %v1732, %v1720
    %v1735 = vsel %vm754, %v1733, %v1726
    %v1736 = vsel %vm754, %v1734, %v1728
    %s1737 = scalar_lea.vmem %s2, 32
    %v1738 = vld [vmem:[%s1737] sm:$0xff]
    %v1739 = vld [vmem:[%s1737 + $0x8] sm:$0xff]
    %v1740 = vld [vmem:[%s1737 + $0x10] sm:$0xff]
    %v1741 = vld [vmem:[%s1737 + $0x18] sm:$0xff]
    %v1742 = vperm.slane %v1015, 1
    %v1744 = vsel %vm66, %v1735, 0
    %v1747 = vsel %vm66, %v1736, 0
    %1749 = vmatpush.msra.mxu0 0.0
    %1750 = vmatpush.msra.mxu0 0.0
    %1751 = vmatpush.msra.mxu0 0.0
    %1752 = vmatpush.msra.mxu0 0.0
    %1753 = vmatpush.msra.mxu0 0.0
    %1754 = vmatpush.msra.mxu0 0.0
    %1755 = vmatpush.msra.mxu0 0.0
    %1756 = vmatpush.msra.mxu0 0.0
    %1757 = vmatpush.msra.mxu0 0.0
    %1758 = vmatpush.msra.mxu0 0.0
    %1759 = vmatpush.msra.mxu0 0.0
    %1760 = vmatpush.msra.mxu0 0.0
    %1761 = vmatpush.msra.mxu0 %v1741
    %1762 = vmatpush.msra.mxu0 %v1740
    %1763 = vmatpush.msra.mxu0 %v1739
    %1764 = vmatpush.msra.mxu0 %v1738
    %1765 = vmatmul.f32.gmra.mxu0 %v1744
    %v1766 = vpop.f32.mrf.mxu0
    %v1767 = vadd.f32 %v1742, %v1766
    %1768 = vmatmul.f32.gmra.mxu0 %v1747
    %v1769 = vpop.f32.mrf.mxu0
    %v1770 = vadd.f32 %v1742, %v1769
    %1771 = vdwg.mxu0
    %v1772 = vadd.f32 %v1007, %v1767
    %v1773 = vadd.f32 %v1008, %v1770
    %v1774 = vsel %vm66, %v1772, 0.0
    %1775 = vadd.xlane.f32.xlu0 %v1774
    %v1776 = vpop.xlane.xlu0 %1775
    %v1777 = vsel %vm66, %v1773, 0.0
    %1778 = vadd.xlane.f32.xlu0 %v1777
    %v1779 = vpop.xlane.xlu0 %1778
    %v1780 = vmul.f32 %v1776, %v837
    %v1781 = vmul.f32 %v1779, %v837
    %v1782 = vsub.f32 %v1772, %v1780
    %v1783 = vsub.f32 %v1773, %v1781
    %v1784 = vmul.f32 %v1782, %v1782
    %v1785 = vmul.f32 %v1783, %v1783
    %v1786 = vsel %vm66, %v1784, 0.0
    %1787 = vadd.xlane.f32.xlu0 %v1786
    %v1788 = vpop.xlane.xlu0 %1787
    %v1789 = vsel %vm66, %v1785, 0.0
    %1790 = vadd.xlane.f32.xlu0 %v1789
    %v1791 = vpop.xlane.xlu0 %1790
    %v1792 = vmul.f32 %v1788, %v837
    %v1793 = vmul.f32 %v1791, %v837
    %v1794 = vadd.f32 %v1792, 1e-05
    %v1795 = vadd.f32 %v1793, 1e-05
    %v1796 = vrsqrt.pop %v1794
    %v1797 = vmul.f32 %v1796, %v1794
    %v1798 = vmul.f32 %v1797, %v1796
    %v1799 = vmul.f32 0.5, %v1798
    %v1800 = vsub.f32 1.5, %v1799
    %v1801 = vmul.f32 %v1796, %v1800
    %vm1802 = vweird.f32 %v1794
    %vm1803 = vweird.f32 %v1796
    %vm1804 = vmor %vm1802, %vm1803
    %v1805 = vsel %vm1804, %v1796, %v1801
    %v1806 = vrsqrt.pop %v1795
    %v1807 = vmul.f32 %v1806, %v1795
    %v1808 = vmul.f32 %v1807, %v1806
    %v1809 = vmul.f32 0.5, %v1808
    %v1810 = vsub.f32 1.5, %v1809
    %v1811 = vmul.f32 %v1806, %v1810
    %vm1812 = vweird.f32 %v1795
    %vm1813 = vweird.f32 %v1806
    %vm1814 = vmor %vm1812, %vm1813
    %v1815 = vsel %vm1814, %v1806, %v1811
    %v1816 = vmul.f32 %v1782, %v1805
    %v1817 = vmul.f32 %v1783, %v1815
    %v1818 = vperm.slane %v1015, 4
    %v1819 = vmul.f32 %v1816, %v1818
    %v1820 = vmul.f32 %v1817, %v1818
    %v1821 = vperm.slane %v1015, 5
    %v1822 = vadd.f32 %v1819, %v1821
    %v1823 = vadd.f32 %v1820, %v1821
    %s1824 = scalar_lea.vmem %s3, 32
    %v1825 = vld [vmem:[%s1824] sm:$0xff]
    %v1826 = vld [vmem:[%s1824 + $0x8] sm:$0xff]
    %v1827 = vld [vmem:[%s1824 + $0x10] sm:$0xff]
    %v1828 = vld [vmem:[%s1824 + $0x18] sm:$0xff]
    %v1829 = vperm.slane %v1015, 2
    %v1831 = vsel %vm66, %v1822, 0
    %v1834 = vsel %vm66, %v1823, 0
    %1836 = vmatpush.msra.mxu0 0.0
    %1837 = vmatpush.msra.mxu0 0.0
    %1838 = vmatpush.msra.mxu0 0.0
    %1839 = vmatpush.msra.mxu0 0.0
    %1840 = vmatpush.msra.mxu0 0.0
    %1841 = vmatpush.msra.mxu0 0.0
    %1842 = vmatpush.msra.mxu0 0.0
    %1843 = vmatpush.msra.mxu0 0.0
    %1844 = vmatpush.msra.mxu0 0.0
    %1845 = vmatpush.msra.mxu0 0.0
    %1846 = vmatpush.msra.mxu0 0.0
    %1847 = vmatpush.msra.mxu0 0.0
    %1848 = vmatpush.msra.mxu0 %v1828
    %1849 = vmatpush.msra.mxu0 %v1827
    %1850 = vmatpush.msra.mxu0 %v1826
    %1851 = vmatpush.msra.mxu0 %v1825
    %1852 = vmatmul.f32.gmra.mxu0 %v1831
    %v1853 = vpop.f32.mrf.mxu0
    %v1854 = vadd.f32 %v1829, %v1853
    %1855 = vmatmul.f32.gmra.mxu0 %v1834
    %v1856 = vpop.f32.mrf.mxu0
    %v1857 = vadd.f32 %v1829, %v1856
    %1858 = vdwg.mxu0
    %v1859 = vmax.f32 %v1854, 0.0
    %v1860 = vmax.f32 %v1857, 0.0
    %s1861 = scalar_lea.vmem %s4, 64
    %v1862 = vld [vmem:[%s1861] sm:$0xff]
    %v1863 = vld [vmem:[%s1861 + $0x8] sm:$0xff]
    %v1864 = vld [vmem:[%s1861 + $0x10] sm:$0xff]
    %v1865 = vld [vmem:[%s1861 + $0x18] sm:$0xff]
    %v1866 = vld [vmem:[%s1861 + $0x20] sm:$0xff]
    %v1867 = vld [vmem:[%s1861 + $0x28] sm:$0xff]
    %v1868 = vld [vmem:[%s1861 + $0x30] sm:$0xff]
    %v1869 = vld [vmem:[%s1861 + $0x38] sm:$0xff]
    %v1870 = vperm.slane %v1015, 3
    %v1872 = vsel %vm927, %v1859, 0
    %v1875 = vsel %vm927, %v1860, 0
    %1877 = vmatpush.msra.mxu0 0.0
    %1878 = vmatpush.msra.mxu0 0.0
    %1879 = vmatpush.msra.mxu0 0.0
    %1880 = vmatpush.msra.mxu0 0.0
    %1881 = vmatpush.msra.mxu0 0.0
    %1882 = vmatpush.msra.mxu0 0.0
    %1883 = vmatpush.msra.mxu0 0.0
    %1884 = vmatpush.msra.mxu0 0.0
    %1885 = vmatpush.msra.mxu0 %v1869
    %1886 = vmatpush.msra.mxu0 %v1868
    %1887 = vmatpush.msra.mxu0 %v1867
    %1888 = vmatpush.msra.mxu0 %v1866
    %1889 = vmatpush.msra.mxu0 %v1865
    %1890 = vmatpush.msra.mxu0 %v1864
    %1891 = vmatpush.msra.mxu0 %v1863
    %1892 = vmatpush.msra.mxu0 %v1862
    %1893 = vmatmul.f32.gmra.mxu0 %v1872
    %v1894 = vpop.f32.mrf.mxu0
    %v1895 = vadd.f32 %v1870, %v1894
    %1896 = vmatmul.f32.gmra.mxu0 %v1875
    %v1897 = vpop.f32.mrf.mxu0
    %v1898 = vadd.f32 %v1870, %v1897
    %1899 = vdwg.mxu0
    %v1900 = vadd.f32 %v1822, %v1895
    %v1901 = vadd.f32 %v1823, %v1898
    %v1902 = vsel %vm66, %v1900, 0.0
    %1903 = vadd.xlane.f32.xlu0 %v1902
    %v1904 = vpop.xlane.xlu0 %1903
    %v1905 = vsel %vm66, %v1901, 0.0
    %1906 = vadd.xlane.f32.xlu0 %v1905
    %v1907 = vpop.xlane.xlu0 %1906
    %v1908 = vmul.f32 %v1904, %v837
    %v1909 = vmul.f32 %v1907, %v837
    %v1910 = vsub.f32 %v1900, %v1908
    %v1911 = vsub.f32 %v1901, %v1909
    %v1912 = vmul.f32 %v1910, %v1910
    %v1913 = vmul.f32 %v1911, %v1911
    %v1914 = vsel %vm66, %v1912, 0.0
    %1915 = vadd.xlane.f32.xlu0 %v1914
    %v1916 = vpop.xlane.xlu0 %1915
    %v1917 = vsel %vm66, %v1913, 0.0
    %1918 = vadd.xlane.f32.xlu0 %v1917
    %v1919 = vpop.xlane.xlu0 %1918
    %v1920 = vmul.f32 %v1916, %v837
    %v1921 = vmul.f32 %v1919, %v837
    %v1922 = vadd.f32 %v1920, 1e-05
    %v1923 = vadd.f32 %v1921, 1e-05
    %v1924 = vrsqrt.pop %v1922
    %v1925 = vmul.f32 %v1924, %v1922
    %v1926 = vmul.f32 %v1925, %v1924
    %v1927 = vmul.f32 0.5, %v1926
    %v1928 = vsub.f32 1.5, %v1927
    %v1929 = vmul.f32 %v1924, %v1928
    %vm1930 = vweird.f32 %v1922
    %vm1931 = vweird.f32 %v1924
    %vm1932 = vmor %vm1930, %vm1931
    %v1933 = vsel %vm1932, %v1924, %v1929
    %v1934 = vrsqrt.pop %v1923
    %v1935 = vmul.f32 %v1934, %v1923
    %v1936 = vmul.f32 %v1935, %v1934
    %v1937 = vmul.f32 0.5, %v1936
    %v1938 = vsub.f32 1.5, %v1937
    %v1939 = vmul.f32 %v1934, %v1938
    %vm1940 = vweird.f32 %v1923
    %vm1941 = vweird.f32 %v1934
    %vm1942 = vmor %vm1940, %vm1941
    %v1943 = vsel %vm1942, %v1934, %v1939
    %v1944 = vmul.f32 %v1910, %v1933
    %v1945 = vmul.f32 %v1911, %v1943
    %v1946 = vperm.slane %v1015, 6
    %v1947 = vmul.f32 %v1944, %v1946
    %v1948 = vmul.f32 %v1945, %v1946
    %v1949 = vperm.slane %v1015, 7
    %v1950 = vadd.f32 %v1947, %v1949
    %v1951 = vadd.f32 %v1948, %v1949
    %1952 = vst.msk [vmem:[#allocation7] sm:$0xff] %vm66, %v1950
    %1953 = vst.msk [vmem:[#allocation7 + $0x8] sm:$0xff] %vm66, %v1951
    // Predicated region
    $region34: #{_encoder_call.1} parent=1 // pred_check
      _
    $region35: #{_encoder_call.1} parent=1 // pred_check_branch
      %1955 = sbr.rel (0) target = $region37
    $region36: #{_encoder_call.1} parent=1 // pred_region
      %1957 = vsyncadd [#allocation4], 0
      %s1958 = sshll.u32 [#allocation7], 4
      %s1959 = int_to_ptr.vmem [resolvable:$true] %s1958
      %s1960 = sshll.u32 %s6, 4
      %s1961 = int_to_ptr.hbm [resolvable:$true] %s1960
      %1966 = dma.vmem_to_hbm [thread:$0]  %s1959, 256, %s1961, [#allocation4], 128, 128, 8
    $region37: #{_encoder_call.1} parent=1 // pred_fallthru
      _
    // Predicated region
    $region38: #{_encoder_call.1} parent=1 // pred_check
      _
    $region39: #{_encoder_call.1} parent=1 // pred_check_branch
      %1968 = sbr.rel (0) target = $region41
    $region40: #{_encoder_call.1} parent=1 // pred_region
      _
    $region41: #{_encoder_call.1} parent=1 // pred_fallthru
      _
    // Predicated region
    $region42: #{_encoder_call.1} parent=1 // pred_check
      _
    $region43: #{_encoder_call.1} parent=1 // pred_check_branch
      %1970 = sbr.rel (0) target = $region45
    $region44: #{_encoder_call.1} parent=1 // pred_region
      %1972 = dma.done [#allocation4], 256
    $region45: #{_encoder_call.1} parent=1 // pred_fallthru
      _
    // Predicated region
    $region46: #{_encoder_call.1} parent=1 // pred_check
      _
    $region47: #{_encoder_call.1} parent=1 // pred_check_branch
      %1974 = sbr.rel (0) target = $region49
    $region48: #{_encoder_call.1} parent=1 // pred_region
      _
    $region49: #{_encoder_call.1} parent=1 // pred_fallthru
      _
    %1975 = vsyncpa [#allocation3], 1
    %1976 = vsyncpa [#allocation6], 1
    %1977 = vsyncpa [#allocation4], 1

</llo_original>
